<compile_context>
chip_gen: v7x
topology: tpu7x:2x2x1
jax: 0.10.0
libtpu: 0.0.40
codegen_flags: <defaults>
</compile_context>

<pallas_src>
import functools
import math

import jax
import jax.numpy as jnp
from jax.experimental import pallas as pl
from jax.experimental.pallas import tpu as pltpu

# ---------------------------------------------------------------------------
# Problem configuration (small, consistent with the module's forward)
# ---------------------------------------------------------------------------
BATCH = 2
SEQ = 8
HIDDEN = 32
NUM_HEADS = 4
HEAD_DIM = HIDDEN // NUM_HEADS
LN_EPS = 1e-5


# ---------------------------------------------------------------------------
# Pallas kernel: whole problem in one grid-free invocation.
#   x_ref    : (B*S, H)
#   wqkv_ref : (3, H, H)   [0]=Wq.T * 1/sqrt(d), [1]=Wk.T, [2]=Wv.T
#   bqkv_ref : (3, 1, H)   [0]=bq * 1/sqrt(d),   [1]=bk,   [2]=bv
#   wo_ref   : (H, H)      out_proj.weight.T
#   bo/gamma/beta : (1, H)
# ---------------------------------------------------------------------------
def _residual_attention_kernel(batch, seq, num_heads, head_dim,
                               x_ref, wqkv_ref, bqkv_ref, wo_ref, bo_ref,
                               gamma_ref, beta_ref, out_ref):
    bs, hidden = x_ref.shape
    x2d = x_ref[...]                                              # (BS, H)

    # --- Q/K/V projections: full-H MXU matmuls, no replication.  Q/K/V are
    # selected by a zero-cost leading-axis index into the packed weight.
    q2d = jnp.dot(x2d, wqkv_ref[0], preferred_element_type=jnp.float32) + bqkv_ref[0]
    k2d = jnp.dot(x2d, wqkv_ref[1], preferred_element_type=jnp.float32) + bqkv_ref[1]
    v2d = jnp.dot(x2d, wqkv_ref[2], preferred_element_type=jnp.float32) + bqkv_ref[2]

    # --- Per-head attention (loop unrolled at trace time).  The head split is
    # the unavoidable _shape() data movement; attention scale is already folded
    # into the Q weights/bias.
    ctx_heads = []
    for h in range(num_heads):
        lo = h * head_dim
        qh = q2d[:, lo:lo + head_dim].reshape(batch, seq, head_dim)
        kh = k2d[:, lo:lo + head_dim].reshape(batch, seq, head_dim)
        vh = v2d[:, lo:lo + head_dim].reshape(batch, seq, head_dim)

        s = jnp.einsum('bqd,bkd->bqk', qh, kh,
                       preferred_element_type=jnp.float32)        # (B, S, S)
        # TODO(synk): optional attention_mask add omitted (forward path uses None).
        s = s - jnp.max(s, axis=-1, keepdims=True)
        e = jnp.exp(s)
        probs = e * pl.reciprocal(jnp.sum(e, axis=-1, keepdims=True), approx=False)
        # TODO(synk): attention-prob dropout (p=0.1) omitted -- eval-mode identity.
        ch = jnp.einsum('bqk,bkd->bqd', probs, vh,
                        preferred_element_type=jnp.float32)       # (B, S, d)
        ctx_heads.append(ch.reshape(bs, head_dim))

    # --- Heads written contiguously into a (BS, H) slab, then ONE (BS,H)@(H,H)
    # output projection (contraction over the full hidden dim, not head_dim).
    ctx2d = jnp.concatenate(ctx_heads, axis=-1)                   # (BS, H)
    attn = jnp.dot(ctx2d, wo_ref[...],
                   preferred_element_type=jnp.float32) + bo_ref[...]

    # --- Residual + LayerNorm.
    y = attn + x2d
    mean = jnp.mean(y, axis=-1, keepdims=True)
    var = jnp.mean(jnp.square(y - mean), axis=-1, keepdims=True)
    y_hat = (y - mean) * jax.lax.rsqrt(var + LN_EPS)
    out_ref[...] = y_hat * gamma_ref[...] + beta_ref[...]


def residual_attention(x, packed, *, num_heads=NUM_HEADS):
    """x: (B, S, H) float32.  packed: kernel-layout params from pack_params()."""
    B, S, H = x.shape
    head_dim = H // num_heads
    x2d = x.reshape(B * S, H)

    kernel = functools.partial(_residual_attention_kernel, B, S, num_heads, head_dim)
    vmem = pl.BlockSpec(memory_space=pltpu.MemorySpace.VMEM)

    out2d = pl.pallas_call(
        kernel,
        out_shape=jax.ShapeDtypeStruct((B * S, H), jnp.float32),
        in_specs=[vmem] * 7,
        out_specs=vmem,
    )(x2d, packed["wqkv"], packed["bqkv"], packed["wo"], packed["bo"],
      packed["gamma"], packed["beta"])
    return out2d.reshape(B, S, H)


# ---------------------------------------------------------------------------
# Parameter init (PyTorch layout) and one-time packing into kernel layout
# ---------------------------------------------------------------------------
def init_params(key, hidden):
    keys = jax.random.split(key, 7)

    def xavier_uniform(k):
        bound = math.sqrt(6.0 / (hidden + hidden))
        return jax.random.uniform(k, (hidden, hidden), jnp.float32, -bound, bound)

    def linear_bias(k):
        bound = 1.0 / math.sqrt(hidden)
        return jax.random.uniform(k, (hidden,), jnp.float32, -bound, bound)

    return dict(
        wq=xavier_uniform(keys[0]), wk=xavier_uniform(keys[1]),
        wv=xavier_uniform(keys[2]), wo=xavier_uniform(keys[3]),
        bq=linear_bias(keys[4]), bk=linear_bias(keys[5]), bv=linear_bias(keys[6]),
        bo=jnp.zeros((hidden,), jnp.float32),           # nn.init.zeros_(out_proj.bias)
        gamma=jnp.ones((hidden,), jnp.float32),         # LayerNorm defaults
        beta=jnp.zeros((hidden,), jnp.float32),
    )


def pack_params(p, num_heads):
    """Fold 1/sqrt(head_dim) into Q; stack Q/K/V weights on a leading axis.  No batch tiling."""
    H = p["wq"].shape[0]
    d = H // num_heads
    scale = 1.0 / math.sqrt(d)
    wqkv = jnp.stack([p["wq"].T * scale, p["wk"].T, p["wv"].T], axis=0)      # (3, H, H)
    bqkv = jnp.stack([p["bq"] * scale, p["bk"], p["bv"]], axis=0)[:, None, :]  # (3, 1, H)
    return dict(
        wqkv=wqkv,
        bqkv=bqkv,
        wo=p["wo"].T,                                                        # (H, H)
        bo=p["bo"].reshape(1, H),
        gamma=p["gamma"].reshape(1, H),
        beta=p["beta"].reshape(1, H),
    )


# ---------------------------------------------------------------------------
# Pure-JAX reference (PyTorch semantics) for correctness check
# ---------------------------------------------------------------------------
def reference(x, p, num_heads=NUM_HEADS):
    B, S, H = x.shape
    d = H // num_heads
    q = x @ p["wq"].T + p["bq"]
    k = x @ p["wk"].T + p["bk"]
    v = x @ p["wv"].T + p["bv"]

    def split(t):
        return t.reshape(B, S, num_heads, d).transpose(0, 2, 1, 3)   # (B, nh, S, d)

    qh, kh, vh = split(q), split(k), split(v)
    scores = jnp.einsum("bhqd,bhkd->bhqk", qh, kh) / math.sqrt(d)
    probs = jax.nn.softmax(scores, axis=-1)
    ctx = jnp.einsum("bhqk,bhkd->bhqd", probs, vh)
    ctx = ctx.transpose(0, 2, 1, 3).reshape(B, S, H)
    out = ctx @ p["wo"].T + p["bo"]
    y = out + x
    mean = jnp.mean(y, axis=-1, keepdims=True)
    var = jnp.mean(jnp.square(y - mean), axis=-1, keepdims=True)
    return (y - mean) * jax.lax.rsqrt(var + LN_EPS) * p["gamma"] + p["beta"]


if __name__ == "__main__":
    key = jax.random.PRNGKey(0)
    k_params, k_x = jax.random.split(key)
    params = init_params(k_params, HIDDEN)
    packed = pack_params(params, NUM_HEADS)
    x = jax.random.normal(k_x, (BATCH, SEQ, HIDDEN), jnp.float32)

    out = residual_attention(x, packed)
    out = jax.block_until_ready(out)

    ref = reference(x, params)
    assert out.shape == (BATCH, SEQ, HIDDEN)
    # Small slack for MXU default-precision / accumulation-order differences.
    assert jnp.allclose(out, ref, rtol=2e-3, atol=2e-3), "mismatch vs pure-JAX reference"
    print("KERNEL_OK")
</pallas_src>

<mosaic_0001>
module attributes {stable_mosaic.version = 11 : i64} {
  func.func @_residual_attention_kernel(%arg0: memref<16x32xf32, #tpu.memory_space<vmem>>, %arg1: memref<3x32x32xf32, #tpu.memory_space<vmem>>, %arg2: memref<3x1x32xf32, #tpu.memory_space<vmem>>, %arg3: memref<32x32xf32, #tpu.memory_space<vmem>>, %arg4: memref<1x32xf32, #tpu.memory_space<vmem>>, %arg5: memref<1x32xf32, #tpu.memory_space<vmem>>, %arg6: memref<1x32xf32, #tpu.memory_space<vmem>>, %arg7: memref<16x32xf32, #tpu.memory_space<vmem>>) attributes {dimension_semantics = [], scalar_prefetch = 0 : i64, scratch_operands = 0 : i64, tpu.core_type = #tpu.core_type<tc>} {
    %c0 = arith.constant 0 : index
    %c0_0 = arith.constant 0 : index
    %0 = vector.load %arg0[%c0, %c0_0] : memref<16x32xf32, #tpu.memory_space<vmem>>, vector<16x32xf32>
    %c0_1 = arith.constant 0 : index
    %c0_2 = arith.constant 0 : index
    %c0_3 = arith.constant 0 : index
    %1 = vector.load %arg1[%c0_1, %c0_2, %c0_3] : memref<3x32x32xf32, #tpu.memory_space<vmem>>, vector<1x32x32xf32>
    %2 = vector.shape_cast %1 : vector<1x32x32xf32> to vector<32x32xf32>
    %cst = arith.constant dense<0.000000e+00> : vector<16x32xf32>
    %3 = tpu.matmul %0, %2, %cst {dimension_numbers = #tpu.dot_dimension_numbers<[1], [0], [0], [1], [0, 0, 1, 1], [], []>} : vector<16x32xf32>, vector<32x32xf32>, vector<16x32xf32> -> vector<16x32xf32>
    %c0_4 = arith.constant 0 : index
    %c0_5 = arith.constant 0 : index
    %c0_6 = arith.constant 0 : index
    %4 = vector.load %arg2[%c0_4, %c0_5, %c0_6] : memref<3x1x32xf32, #tpu.memory_space<vmem>>, vector<1x1x32xf32>
    %5 = vector.shape_cast %4 : vector<1x1x32xf32> to vector<1x32xf32>
    %6 = vector.broadcast %5 : vector<1x32xf32> to vector<16x32xf32>
    %7 = arith.addf %3, %6 : vector<16x32xf32>
    %c1 = arith.constant 1 : index
    %c0_7 = arith.constant 0 : index
    %c0_8 = arith.constant 0 : index
    %8 = vector.load %arg1[%c1, %c0_7, %c0_8] : memref<3x32x32xf32, #tpu.memory_space<vmem>>, vector<1x32x32xf32>
    %9 = vector.shape_cast %8 : vector<1x32x32xf32> to vector<32x32xf32>
    %cst_9 = arith.constant dense<0.000000e+00> : vector<16x32xf32>
    %10 = tpu.matmul %0, %9, %cst_9 {dimension_numbers = #tpu.dot_dimension_numbers<[1], [0], [0], [1], [0, 0, 1, 1], [], []>} : vector<16x32xf32>, vector<32x32xf32>, vector<16x32xf32> -> vector<16x32xf32>
    %c1_10 = arith.constant 1 : index
    %c0_11 = arith.constant 0 : index
    %c0_12 = arith.constant 0 : index
    %11 = vector.load %arg2[%c1_10, %c0_11, %c0_12] : memref<3x1x32xf32, #tpu.memory_space<vmem>>, vector<1x1x32xf32>
    %12 = vector.shape_cast %11 : vector<1x1x32xf32> to vector<1x32xf32>
    %13 = vector.broadcast %12 : vector<1x32xf32> to vector<16x32xf32>
    %14 = arith.addf %10, %13 : vector<16x32xf32>
    %c2 = arith.constant 2 : index
    %c0_13 = arith.constant 0 : index
    %c0_14 = arith.constant 0 : index
    %15 = vector.load %arg1[%c2, %c0_13, %c0_14] : memref<3x32x32xf32, #tpu.memory_space<vmem>>, vector<1x32x32xf32>
    %16 = vector.shape_cast %15 : vector<1x32x32xf32> to vector<32x32xf32>
    %cst_15 = arith.constant dense<0.000000e+00> : vector<16x32xf32>
    %17 = tpu.matmul %0, %16, %cst_15 {dimension_numbers = #tpu.dot_dimension_numbers<[1], [0], [0], [1], [0, 0, 1, 1], [], []>} : vector<16x32xf32>, vector<32x32xf32>, vector<16x32xf32> -> vector<16x32xf32>
    %c2_16 = arith.constant 2 : index
    %c0_17 = arith.constant 0 : index
    %c0_18 = arith.constant 0 : index
    %18 = vector.load %arg2[%c2_16, %c0_17, %c0_18] : memref<3x1x32xf32, #tpu.memory_space<vmem>>, vector<1x1x32xf32>
    %19 = vector.shape_cast %18 : vector<1x1x32xf32> to vector<1x32xf32>
    %20 = vector.broadcast %19 : vector<1x32xf32> to vector<16x32xf32>
    %21 = arith.addf %17, %20 : vector<16x32xf32>
    %22 = vector.extract_strided_slice %7 {offsets = [0, 0], sizes = [16, 8], strides = [1, 1]} : vector<16x32xf32> to vector<16x8xf32>
    %23 = vector.shape_cast %22 : vector<16x8xf32> to vector<2x8x8xf32>
    %24 = vector.extract_strided_slice %14 {offsets = [0, 0], sizes = [16, 8], strides = [1, 1]} : vector<16x32xf32> to vector<16x8xf32>
    %25 = vector.shape_cast %24 : vector<16x8xf32> to vector<2x8x8xf32>
    %26 = vector.extract_strided_slice %21 {offsets = [0, 0], sizes = [16, 8], strides = [1, 1]} : vector<16x32xf32> to vector<16x8xf32>
    %27 = vector.shape_cast %26 : vector<16x8xf32> to vector<2x8x8xf32>
    "tpu.trace_start"() <{level = 10 : i32, message = "bqd,bkd->bqk"}> : () -> ()
    %cst_19 = arith.constant dense<0.000000e+00> : vector<2x8x8xf32>
    %28 = tpu.matmul %23, %25, %cst_19 {dimension_numbers = #tpu.dot_dimension_numbers<[2], [2], [1], [1], [0, 0, 0, 1, 1, 1], [0], [0]>} : vector<2x8x8xf32>, vector<2x8x8xf32>, vector<2x8x8xf32> -> vector<2x8x8xf32>
    "tpu.trace_stop"() : () -> ()
    %cst_20 = arith.constant dense<0xFF800000> : vector<2x8xf32>
    %29 = vector.multi_reduction <maximumf>, %28, %cst_20 [2] : vector<2x8x8xf32> to vector<2x8xf32>
    %30 = vector.shape_cast %29 : vector<2x8xf32> to vector<2x8x1xf32>
    %31 = vector.broadcast %30 : vector<2x8x1xf32> to vector<2x8x8xf32>
    %32 = arith.subf %28, %31 : vector<2x8x8xf32>
    %33 = math.exp %32 : vector<2x8x8xf32>
    %cst_21 = arith.constant dense<0.000000e+00> : vector<2x8xf32>
    %34 = vector.multi_reduction <add>, %33, %cst_21 [2] : vector<2x8x8xf32> to vector<2x8xf32>
    %35 = vector.shape_cast %34 : vector<2x8xf32> to vector<2x8x1xf32>
    %36 = tpu.reciprocal %35 : vector<2x8x1xf32> -> vector<2x8x1xf32>
    %37 = vector.broadcast %36 : vector<2x8x1xf32> to vector<2x8x8xf32>
    %38 = arith.mulf %33, %37 : vector<2x8x8xf32>
    "tpu.trace_start"() <{level = 10 : i32, message = "bqk,bkd->bqd"}> : () -> ()
    %cst_22 = arith.constant dense<0.000000e+00> : vector<2x8x8xf32>
    %39 = tpu.matmul %38, %27, %cst_22 {dimension_numbers = #tpu.dot_dimension_numbers<[2], [1], [1], [2], [0, 0, 0, 1, 1, 2], [0], [0]>} : vector<2x8x8xf32>, vector<2x8x8xf32>, vector<2x8x8xf32> -> vector<2x8x8xf32>
    "tpu.trace_stop"() : () -> ()
    %40 = vector.shape_cast %39 : vector<2x8x8xf32> to vector<16x8xf32>
    %41 = vector.extract_strided_slice %7 {offsets = [0, 8], sizes = [16, 8], strides = [1, 1]} : vector<16x32xf32> to vector<16x8xf32>
    %42 = vector.shape_cast %41 : vector<16x8xf32> to vector<2x8x8xf32>
    %43 = vector.extract_strided_slice %14 {offsets = [0, 8], sizes = [16, 8], strides = [1, 1]} : vector<16x32xf32> to vector<16x8xf32>
    %44 = vector.shape_cast %43 : vector<16x8xf32> to vector<2x8x8xf32>
    %45 = vector.extract_strided_slice %21 {offsets = [0, 8], sizes = [16, 8], strides = [1, 1]} : vector<16x32xf32> to vector<16x8xf32>
    %46 = vector.shape_cast %45 : vector<16x8xf32> to vector<2x8x8xf32>
    "tpu.trace_start"() <{level = 10 : i32, message = "bqd,bkd->bqk"}> : () -> ()
    %cst_23 = arith.constant dense<0.000000e+00> : vector<2x8x8xf32>
    %47 = tpu.matmul %42, %44, %cst_23 {dimension_numbers = #tpu.dot_dimension_numbers<[2], [2], [1], [1], [0, 0, 0, 1, 1, 1], [0], [0]>} : vector<2x8x8xf32>, vector<2x8x8xf32>, vector<2x8x8xf32> -> vector<2x8x8xf32>
    "tpu.trace_stop"() : () -> ()
    %cst_24 = arith.constant dense<0xFF800000> : vector<2x8xf32>
    %48 = vector.multi_reduction <maximumf>, %47, %cst_24 [2] : vector<2x8x8xf32> to vector<2x8xf32>
    %49 = vector.shape_cast %48 : vector<2x8xf32> to vector<2x8x1xf32>
    %50 = vector.broadcast %49 : vector<2x8x1xf32> to vector<2x8x8xf32>
    %51 = arith.subf %47, %50 : vector<2x8x8xf32>
    %52 = math.exp %51 : vector<2x8x8xf32>
    %cst_25 = arith.constant dense<0.000000e+00> : vector<2x8xf32>
    %53 = vector.multi_reduction <add>, %52, %cst_25 [2] : vector<2x8x8xf32> to vector<2x8xf32>
    %54 = vector.shape_cast %53 : vector<2x8xf32> to vector<2x8x1xf32>
    %55 = tpu.reciprocal %54 : vector<2x8x1xf32> -> vector<2x8x1xf32>
    %56 = vector.broadcast %55 : vector<2x8x1xf32> to vector<2x8x8xf32>
    %57 = arith.mulf %52, %56 : vector<2x8x8xf32>
    "tpu.trace_start"() <{level = 10 : i32, message = "bqk,bkd->bqd"}> : () -> ()
    %cst_26 = arith.constant dense<0.000000e+00> : vector<2x8x8xf32>
    %58 = tpu.matmul %57, %46, %cst_26 {dimension_numbers = #tpu.dot_dimension_numbers<[2], [1], [1], [2], [0, 0, 0, 1, 1, 2], [0], [0]>} : vector<2x8x8xf32>, vector<2x8x8xf32>, vector<2x8x8xf32> -> vector<2x8x8xf32>
    "tpu.trace_stop"() : () -> ()
    %59 = vector.shape_cast %58 : vector<2x8x8xf32> to vector<16x8xf32>
    %60 = vector.extract_strided_slice %7 {offsets = [0, 16], sizes = [16, 8], strides = [1, 1]} : vector<16x32xf32> to vector<16x8xf32>
    %61 = vector.shape_cast %60 : vector<16x8xf32> to vector<2x8x8xf32>
    %62 = vector.extract_strided_slice %14 {offsets = [0, 16], sizes = [16, 8], strides = [1, 1]} : vector<16x32xf32> to vector<16x8xf32>
    %63 = vector.shape_cast %62 : vector<16x8xf32> to vector<2x8x8xf32>
    %64 = vector.extract_strided_slice %21 {offsets = [0, 16], sizes = [16, 8], strides = [1, 1]} : vector<16x32xf32> to vector<16x8xf32>
    %65 = vector.shape_cast %64 : vector<16x8xf32> to vector<2x8x8xf32>
    "tpu.trace_start"() <{level = 10 : i32, message = "bqd,bkd->bqk"}> : () -> ()
    %cst_27 = arith.constant dense<0.000000e+00> : vector<2x8x8xf32>
    %66 = tpu.matmul %61, %63, %cst_27 {dimension_numbers = #tpu.dot_dimension_numbers<[2], [2], [1], [1], [0, 0, 0, 1, 1, 1], [0], [0]>} : vector<2x8x8xf32>, vector<2x8x8xf32>, vector<2x8x8xf32> -> vector<2x8x8xf32>
    "tpu.trace_stop"() : () -> ()
    %cst_28 = arith.constant dense<0xFF800000> : vector<2x8xf32>
    %67 = vector.multi_reduction <maximumf>, %66, %cst_28 [2] : vector<2x8x8xf32> to vector<2x8xf32>
    %68 = vector.shape_cast %67 : vector<2x8xf32> to vector<2x8x1xf32>
    %69 = vector.broadcast %68 : vector<2x8x1xf32> to vector<2x8x8xf32>
    %70 = arith.subf %66, %69 : vector<2x8x8xf32>
    %71 = math.exp %70 : vector<2x8x8xf32>
    %cst_29 = arith.constant dense<0.000000e+00> : vector<2x8xf32>
    %72 = vector.multi_reduction <add>, %71, %cst_29 [2] : vector<2x8x8xf32> to vector<2x8xf32>
    %73 = vector.shape_cast %72 : vector<2x8xf32> to vector<2x8x1xf32>
    %74 = tpu.reciprocal %73 : vector<2x8x1xf32> -> vector<2x8x1xf32>
    %75 = vector.broadcast %74 : vector<2x8x1xf32> to vector<2x8x8xf32>
    %76 = arith.mulf %71, %75 : vector<2x8x8xf32>
    "tpu.trace_start"() <{level = 10 : i32, message = "bqk,bkd->bqd"}> : () -> ()
    %cst_30 = arith.constant dense<0.000000e+00> : vector<2x8x8xf32>
    %77 = tpu.matmul %76, %65, %cst_30 {dimension_numbers = #tpu.dot_dimension_numbers<[2], [1], [1], [2], [0, 0, 0, 1, 1, 2], [0], [0]>} : vector<2x8x8xf32>, vector<2x8x8xf32>, vector<2x8x8xf32> -> vector<2x8x8xf32>
    "tpu.trace_stop"() : () -> ()
    %78 = vector.shape_cast %77 : vector<2x8x8xf32> to vector<16x8xf32>
    %79 = vector.extract_strided_slice %7 {offsets = [0, 24], sizes = [16, 8], strides = [1, 1]} : vector<16x32xf32> to vector<16x8xf32>
    %80 = vector.shape_cast %79 : vector<16x8xf32> to vector<2x8x8xf32>
    %81 = vector.extract_strided_slice %14 {offsets = [0, 24], sizes = [16, 8], strides = [1, 1]} : vector<16x32xf32> to vector<16x8xf32>
    %82 = vector.shape_cast %81 : vector<16x8xf32> to vector<2x8x8xf32>
    %83 = vector.extract_strided_slice %21 {offsets = [0, 24], sizes = [16, 8], strides = [1, 1]} : vector<16x32xf32> to vector<16x8xf32>
    %84 = vector.shape_cast %83 : vector<16x8xf32> to vector<2x8x8xf32>
    "tpu.trace_start"() <{level = 10 : i32, message = "bqd,bkd->bqk"}> : () -> ()
    %cst_31 = arith.constant dense<0.000000e+00> : vector<2x8x8xf32>
    %85 = tpu.matmul %80, %82, %cst_31 {dimension_numbers = #tpu.dot_dimension_numbers<[2], [2], [1], [1], [0, 0, 0, 1, 1, 1], [0], [0]>} : vector<2x8x8xf32>, vector<2x8x8xf32>, vector<2x8x8xf32> -> vector<2x8x8xf32>
    "tpu.trace_stop"() : () -> ()
    %cst_32 = arith.constant dense<0xFF800000> : vector<2x8xf32>
    %86 = vector.multi_reduction <maximumf>, %85, %cst_32 [2] : vector<2x8x8xf32> to vector<2x8xf32>
    %87 = vector.shape_cast %86 : vector<2x8xf32> to vector<2x8x1xf32>
    %88 = vector.broadcast %87 : vector<2x8x1xf32> to vector<2x8x8xf32>
    %89 = arith.subf %85, %88 : vector<2x8x8xf32>
    %90 = math.exp %89 : vector<2x8x8xf32>
    %cst_33 = arith.constant dense<0.000000e+00> : vector<2x8xf32>
    %91 = vector.multi_reduction <add>, %90, %cst_33 [2] : vector<2x8x8xf32> to vector<2x8xf32>
    %92 = vector.shape_cast %91 : vector<2x8xf32> to vector<2x8x1xf32>
    %93 = tpu.reciprocal %92 : vector<2x8x1xf32> -> vector<2x8x1xf32>
    %94 = vector.broadcast %93 : vector<2x8x1xf32> to vector<2x8x8xf32>
    %95 = arith.mulf %90, %94 : vector<2x8x8xf32>
    "tpu.trace_start"() <{level = 10 : i32, message = "bqk,bkd->bqd"}> : () -> ()
    %cst_34 = arith.constant dense<0.000000e+00> : vector<2x8x8xf32>
    %96 = tpu.matmul %95, %84, %cst_34 {dimension_numbers = #tpu.dot_dimension_numbers<[2], [1], [1], [2], [0, 0, 0, 1, 1, 2], [0], [0]>} : vector<2x8x8xf32>, vector<2x8x8xf32>, vector<2x8x8xf32> -> vector<2x8x8xf32>
    "tpu.trace_stop"() : () -> ()
    %97 = vector.shape_cast %96 : vector<2x8x8xf32> to vector<16x8xf32>
    %98 = tpu.concatenate %40, %59, %78, %97 in 1 : vector<16x8xf32>, vector<16x8xf32>, vector<16x8xf32>, vector<16x8xf32> -> vector<16x32xf32>
    %c0_35 = arith.constant 0 : index
    %c0_36 = arith.constant 0 : index
    %99 = vector.load %arg3[%c0_35, %c0_36] : memref<32x32xf32, #tpu.memory_space<vmem>>, vector<32x32xf32>
    %cst_37 = arith.constant dense<0.000000e+00> : vector<16x32xf32>
    %100 = tpu.matmul %98, %99, %cst_37 {dimension_numbers = #tpu.dot_dimension_numbers<[1], [0], [0], [1], [0, 0, 1, 1], [], []>} : vector<16x32xf32>, vector<32x32xf32>, vector<16x32xf32> -> vector<16x32xf32>
    %c0_38 = arith.constant 0 : index
    %c0_39 = arith.constant 0 : index
    %101 = vector.load %arg4[%c0_38, %c0_39] : memref<1x32xf32, #tpu.memory_space<vmem>>, vector<1x32xf32>
    %102 = vector.broadcast %101 : vector<1x32xf32> to vector<16x32xf32>
    %103 = arith.addf %100, %102 : vector<16x32xf32>
    %104 = arith.addf %103, %0 : vector<16x32xf32>
    %cst_40 = arith.constant dense<0.000000e+00> : vector<16xf32>
    %105 = vector.multi_reduction <add>, %104, %cst_40 [1] : vector<16x32xf32> to vector<16xf32>
    %106 = vector.shape_cast %105 : vector<16xf32> to vector<16x1xf32>
    %cst_41 = arith.constant 3.200000e+01 : f32
    %107 = vector.broadcast %cst_41 : f32 to vector<16x1xf32>
    %108 = arith.divf %106, %107 : vector<16x1xf32>
    %109 = vector.broadcast %108 : vector<16x1xf32> to vector<16x32xf32>
    %110 = arith.subf %104, %109 : vector<16x32xf32>
    %111 = arith.mulf %110, %110 : vector<16x32xf32>
    %cst_42 = arith.constant dense<0.000000e+00> : vector<16xf32>
    %112 = vector.multi_reduction <add>, %111, %cst_42 [1] : vector<16x32xf32> to vector<16xf32>
    %113 = vector.shape_cast %112 : vector<16xf32> to vector<16x1xf32>
    %cst_43 = arith.constant 3.200000e+01 : f32
    %114 = vector.broadcast %cst_43 : f32 to vector<16x1xf32>
    %115 = arith.divf %113, %114 : vector<16x1xf32>
    %116 = vector.broadcast %108 : vector<16x1xf32> to vector<16x32xf32>
    %117 = arith.subf %104, %116 : vector<16x32xf32>
    %cst_44 = arith.constant 9.99999974E-6 : f32
    %118 = vector.broadcast %cst_44 : f32 to vector<16x1xf32>
    %119 = arith.addf %115, %118 : vector<16x1xf32>
    %120 = math.rsqrt %119 : vector<16x1xf32>
    %121 = vector.broadcast %120 : vector<16x1xf32> to vector<16x32xf32>
    %122 = arith.mulf %117, %121 : vector<16x32xf32>
    %c0_45 = arith.constant 0 : index
    %c0_46 = arith.constant 0 : index
    %123 = vector.load %arg5[%c0_45, %c0_46] : memref<1x32xf32, #tpu.memory_space<vmem>>, vector<1x32xf32>
    %124 = vector.broadcast %123 : vector<1x32xf32> to vector<16x32xf32>
    %125 = arith.mulf %122, %124 : vector<16x32xf32>
    %c0_47 = arith.constant 0 : index
    %c0_48 = arith.constant 0 : index
    %126 = vector.load %arg6[%c0_47, %c0_48] : memref<1x32xf32, #tpu.memory_space<vmem>>, vector<1x32xf32>
    %127 = vector.broadcast %126 : vector<1x32xf32> to vector<16x32xf32>
    %128 = arith.addf %125, %127 : vector<16x32xf32>
    %c0_49 = arith.constant 0 : index
    %c0_50 = arith.constant 0 : index
    %129 = vector.load %arg7[%c0_49, %c0_50] : memref<16x32xf32, #tpu.memory_space<vmem>>, vector<16x32xf32>
    tpu.vector_store %arg7[%c0_49, %c0_50], %128 {strides = array<i32>} : memref<16x32xf32, #tpu.memory_space<vmem>>, vector<16x32xf32>,
    return
  }
}

</mosaic_0001>

<llo_original>
// kernel: tpu_custom_call.1
$region0: #{tpu_custom_call.1}
  #allocation0 [shape = 'u32[]', space=smem, size = 0x4, offset = 0x4, fixed_abs, tag = 'smem constant byte address 0x4 - core index']
  #allocation1 [shape = 'u32[144,128]{1,0:T(1,128)}', space=vmem, size = 0x12000, scoped, tag = 'internal scratch']
  %s0 = inlined_call_operand.hbm [shape: f32[16,32], index: 0, kind: input, shape index: {}]
  %s1 = inlined_call_operand.hbm [shape: f32[3,32,32], index: 1, kind: input, shape index: {}]
  %s2 = inlined_call_operand.vmem [shape: f32[3,1,32], index: 2, kind: input, shape index: {}]
  %s3 = inlined_call_operand.hbm [shape: f32[32,32], index: 3, kind: input, shape index: {}]
  %s4 = inlined_call_operand.vmem [shape: f32[1,32], index: 4, kind: input, shape index: {}]
  %s5 = inlined_call_operand.vmem [shape: f32[1,32], index: 5, kind: input, shape index: {}]
  %s6 = inlined_call_operand.vmem [shape: f32[1,32], index: 6, kind: input, shape index: {}]
  %s7 = inlined_call_operand.hbm [shape: f32[16,32], index: 7, kind: output, shape index: {}]
  %s8 = sld [smem:[#allocation0]]
  $region50: #{tpu_custom_call.1} parent=0
    _
  %s10 = ssub.s32 1, %s8
  %s11 = scalar_select 0, %s10, %s8
  $region1: #{tpu_custom_call.1} parent=0
    #allocation2 [shape = 'u8[8192]{0}', space=vmem, size = 0x2000, scoped, tag = 'input window, operand 0, single buffered']
    #allocation3 [shape = 's32[1]{0}', space=sflag, size = 0x4, scoped, tag = 'scoped memory for tpu_custom_call.1']
    #allocation4 [shape = 's32[1]{0}', space=sflag, size = 0x4, scoped, tag = 'scoped memory for tpu_custom_call.1']
    #allocation5 [shape = 'u8[49152]{0}', space=vmem, size = 0xc000, scoped, tag = 'input window, operand 1, single buffered']
    #allocation6 [shape = 's32[1]{0}', space=sflag, size = 0x4, scoped, tag = 'scoped memory for tpu_custom_call.1']
    #allocation7 [shape = 'u8[16384]{0}', space=vmem, size = 0x4000, scoped, tag = 'input window, operand 3, single buffered']
    #allocation8 [shape = 'u8[8192]{0}', space=vmem, size = 0x2000, scoped, tag = 'output window, operand 0, single buffered']
    %12 = vsyncpa [#allocation3], 0
    %13 = vsyncpa [#allocation6], 0
    %14 = vsyncpa [#allocation4], 0
    // Predicated region
    $region2: #{tpu_custom_call.1} parent=1 // pred_check
      _
    $region3: #{tpu_custom_call.1} parent=1 // pred_check_branch
      %16 = sbr.rel (0) target = $region5
    $region4: #{tpu_custom_call.1} parent=1 // pred_region
      %s18 = ssub.s32 256, 256
      %19 = vsyncadd [#allocation3], %s18
      %s20 = sshll.u32 [#allocation2], 4
      %s21 = int_to_ptr.vmem [resolvable:$true] %s20
      %26 = dma.hbm_to_vmem [thread:$0]  %s0, 256, %s21, [#allocation3], 128, 128, 8
    $region5: #{tpu_custom_call.1} parent=1 // pred_fallthru
      _
    // Predicated region
    $region6: #{tpu_custom_call.1} parent=1 // pred_check
      _
    $region7: #{tpu_custom_call.1} parent=1 // pred_check_branch
      %28 = sbr.rel (0) target = $region9
    $region8: #{tpu_custom_call.1} parent=1 // pred_region
      %s30 = ssub.s32 1536, 1536
      %31 = vsyncadd [#allocation6], %s30
      %s32 = sshll.u32 [#allocation5], 4
      %s33 = int_to_ptr.vmem [resolvable:$true] %s32
      %38 = dma.hbm_to_vmem [thread:$0]  %s1, 1536, %s33, [#allocation6], 128, 128, 8
    $region9: #{tpu_custom_call.1} parent=1 // pred_fallthru
      _
    // Predicated region
    $region10: #{tpu_custom_call.1} parent=1 // pred_check
      _
    $region11: #{tpu_custom_call.1} parent=1 // pred_check_branch
      %40 = sbr.rel (0) target = $region13
    $region12: #{tpu_custom_call.1} parent=1 // pred_region
      _
    $region13: #{tpu_custom_call.1} parent=1 // pred_fallthru
      _
    // Predicated region
    $region14: #{tpu_custom_call.1} parent=1 // pred_check
      _
    $region15: #{tpu_custom_call.1} parent=1 // pred_check_branch
      %42 = sbr.rel (0) target = $region17
    $region16: #{tpu_custom_call.1} parent=1 // pred_region
      %s44 = ssub.s32 512, 512
      %45 = vsyncadd [#allocation6], %s44
      %s46 = sshll.u32 [#allocation7], 4
      %s47 = int_to_ptr.vmem [resolvable:$true] %s46
      %52 = dma.hbm_to_vmem [thread:$0]  %s3, 512, %s47, [#allocation6], 128, 128, 8
    $region17: #{tpu_custom_call.1} parent=1 // pred_fallthru
      _
    // Predicated region
    $region18: #{tpu_custom_call.1} parent=1 // pred_check
      _
    $region19: #{tpu_custom_call.1} parent=1 // pred_check_branch
      %54 = sbr.rel (0) target = $region21
    $region20: #{tpu_custom_call.1} parent=1 // pred_region
      _
    $region21: #{tpu_custom_call.1} parent=1 // pred_fallthru
      _
    // Predicated region
    $region22: #{tpu_custom_call.1} parent=1 // pred_check
      _
    $region23: #{tpu_custom_call.1} parent=1 // pred_check_branch
      %56 = sbr.rel (0) target = $region25
    $region24: #{tpu_custom_call.1} parent=1 // pred_region
      _
    $region25: #{tpu_custom_call.1} parent=1 // pred_fallthru
      _
    // Predicated region
    $region26: #{tpu_custom_call.1} parent=1 // pred_check
      _
    $region27: #{tpu_custom_call.1} parent=1 // pred_check_branch
      %58 = sbr.rel (0) target = $region29
    $region28: #{tpu_custom_call.1} parent=1 // pred_region
      _
    $region29: #{tpu_custom_call.1} parent=1 // pred_fallthru
      _
    // Predicated region
    $region30: #{tpu_custom_call.1} parent=1 // pred_check
      _
    $region31: #{tpu_custom_call.1} parent=1 // pred_check_branch
      %60 = sbr.rel (0) target = $region33
    $region32: #{tpu_custom_call.1} parent=1 // pred_region
      %61 = dma.done [#allocation3], 256
    $region33: #{tpu_custom_call.1} parent=1 // pred_fallthru
      _
    // Predicated region
    $region34: #{tpu_custom_call.1} parent=1 // pred_check
      _
    $region35: #{tpu_custom_call.1} parent=1 // pred_check_branch
      %63 = sbr.rel (0) target = $region37
    $region36: #{tpu_custom_call.1} parent=1 // pred_region
      %64 = dma.done [#allocation6], 1536
    $region37: #{tpu_custom_call.1} parent=1 // pred_fallthru
      _
    // Predicated region
    $region38: #{tpu_custom_call.1} parent=1 // pred_check
      _
    $region39: #{tpu_custom_call.1} parent=1 // pred_check_branch
      %66 = sbr.rel (0) target = $region41
    $region40: #{tpu_custom_call.1} parent=1 // pred_region
      %67 = dma.done [#allocation6], 512
    $region41: #{tpu_custom_call.1} parent=1 // pred_fallthru
      _
    %v68 = vld [vmem:[#allocation2] sm:$0xff]
    %v69 = vld [vmem:[#allocation2 + $0x8] sm:$0xff]
    %v70 = vld [vmem:[#allocation5] sm:$0xff]
    %v71 = vld [vmem:[#allocation5 + $0x8] sm:$0xff]
    %v72 = vld [vmem:[#allocation5 + $0x10] sm:$0xff]
    %v73 = vld [vmem:[#allocation5 + $0x18] sm:$0xff]
    %v74 = vld [vmem:[%s2] sm:$0x1]
    %v76 = vlaneseq
    %v77 = vshrl.u32 %v76, 7
    %v78 = vsub.s32 0, %v77
    %v79 = vrot.slane %v74, %v78
    %vm81 = vcmask 261120
    %v83 = vsel %vm81, %v68, 0
    %v86 = vsel %vm81, %v69, 0
    %88 = vmatprep.subr.mxu0 0.0
    %89 = vmatpush1.msra.mxu0 %v70
    %90 = vmatprep.subr.mxu0 0.0
    %91 = vmatpush1.msra.mxu0 %v71
    %92 = vmatprep.subr.mxu0 0.0
    %93 = vmatpush1.msra.mxu0 %v72
    %94 = vmatprep.subr.mxu0 0.0
    %95 = vmatpush1.msra.mxu0 %v73
    %96 = vmatprep.subr.mxu0 0.0
    %97 = vmatpush1.msra.mxu0 0.0
    %98 = vmatprep.subr.mxu0 0.0
    %99 = vmatpush1.msra.mxu0 0.0
    %100 = vmatprep.subr.mxu0 0.0
    %101 = vmatpush1.msra.mxu0 0.0
    %102 = vmatprep.subr.mxu0 0.0
    %103 = vmatpush1.msra.mxu0 0.0
    %104 = vmatprep.subr.mxu0 0.0
    %105 = vmatpush1.msra.mxu0 0.0
    %106 = vmatprep.subr.mxu0 0.0
    %107 = vmatpush1.msra.mxu0 0.0
    %108 = vmatprep.subr.mxu0 0.0
    %109 = vmatpush1.msra.mxu0 0.0
    %110 = vmatprep.subr.mxu0 0.0
    %111 = vmatpush1.msra.mxu0 0.0
    %112 = vmatprep.subr.mxu0 0.0
    %113 = vmatpush1.msra.mxu0 0.0
    %114 = vmatprep.subr.mxu0 0.0
    %115 = vmatpush1.msra.mxu0 0.0
    %116 = vmatprep.subr.mxu0 0.0
    %117 = vmatpush1.msra.mxu0 0.0
    %118 = vmatprep.subr.mxu0 0.0
    %119 = vmatpush1.msra.mxu0 0.0
    %120 = vmatprep.subr.mxu0 0.0
    %121 = vmatpush1.msra.mxu0 0.0
    %122 = vmatprep.subr.mxu0 0.0
    %123 = vmatpush1.msra.mxu0 0.0
    %124 = vmatprep.subr.mxu0 0.0
    %125 = vmatpush1.msra.mxu0 0.0
    %126 = vmatprep.subr.mxu0 0.0
    %127 = vmatpush1.msra.mxu0 0.0
    %128 = vmatprep.subr.mxu0 0.0
    %129 = vmatpush1.msra.mxu0 0.0
    %130 = vmatprep.subr.mxu0 0.0
    %131 = vmatpush1.msra.mxu0 0.0
    %132 = vmatprep.subr.mxu0 0.0
    %133 = vmatpush1.msra.mxu0 0.0
    %134 = vmatprep.subr.mxu0 0.0
    %135 = vmatpush1.msra.mxu0 0.0
    %136 = vmatprep.subr.mxu0 0.0
    %137 = vmatpush1.msra.mxu0 0.0
    %138 = vmatprep.subr.mxu0 0.0
    %139 = vmatpush1.msra.mxu0 0.0
    %140 = vmatprep.subr.mxu0 0.0
    %141 = vmatpush1.msra.mxu0 0.0
    %142 = vmatprep.subr.mxu0 0.0
    %143 = vmatpush1.msra.mxu0 0.0
    %144 = vmatprep.subr.mxu0 0.0
    %145 = vmatpush1.msra.mxu0 0.0
    %146 = vmatprep.subr.mxu0 0.0
    %147 = vmatpush1.msra.mxu0 0.0
    %148 = vmatprep.subr.mxu0 0.0
    %149 = vmatpush1.msra.mxu0 0.0
    %150 = vmatprep.subr.mxu0 0.0
    %151 = vmatpush1.msra.mxu0 0.0
    %152 = vmatprep.mubr.f32.mxu0 0.0
    %153 = vmatmul.mubr.f32.gmra.mrb[0].mxu0 %v83
    %v154 = vpop.f32.mrb[0].mxu0
    %v155 = vadd.f32 %v79, %v154
    %v156 = vpop.f32.mrb[0].mxu0
    %157 = vmatprep.mubr.f32.mxu0 0.0
    %158 = vmatmul.mubr.f32.gmra.mrb[0].mxu0 %v86
    %v159 = vpop.f32.mrb[0].mxu0
    %v160 = vadd.f32 %v79, %v159
    %v161 = vpop.f32.mrb[0].mxu0
    %162 = vdwg.mxu0
    %s163 = scalar_lea.vmem [#allocation5], 32
    %v164 = vld [vmem:[%s163] sm:$0xff]
    %v165 = vld [vmem:[%s163 + $0x8] sm:$0xff]
    %v166 = vld [vmem:[%s163 + $0x10] sm:$0xff]
    %v167 = vld [vmem:[%s163 + $0x18] sm:$0xff]
    %s168 = scalar_lea.vmem %s2, 1
    %v169 = vld [vmem:[%s168] sm:$0x1]
    %v171 = vlaneseq
    %v172 = vshrl.u32 %v171, 7
    %v173 = vsub.s32 0, %v172
    %v174 = vrot.slane %v169, %v173
    %176 = vmatprep.subr.mxu0 0.0
    %177 = vmatpush1.msra.mxu0 %v164
    %178 = vmatprep.subr.mxu0 0.0
    %179 = vmatpush1.msra.mxu0 %v165
    %180 = vmatprep.subr.mxu0 0.0
    %181 = vmatpush1.msra.mxu0 %v166
    %182 = vmatprep.subr.mxu0 0.0
    %183 = vmatpush1.msra.mxu0 %v167
    %184 = vmatprep.subr.mxu0 0.0
    %185 = vmatpush1.msra.mxu0 0.0
    %186 = vmatprep.subr.mxu0 0.0
    %187 = vmatpush1.msra.mxu0 0.0
    %188 = vmatprep.subr.mxu0 0.0
    %189 = vmatpush1.msra.mxu0 0.0
    %190 = vmatprep.subr.mxu0 0.0
    %191 = vmatpush1.msra.mxu0 0.0
    %192 = vmatprep.subr.mxu0 0.0
    %193 = vmatpush1.msra.mxu0 0.0
    %194 = vmatprep.subr.mxu0 0.0
    %195 = vmatpush1.msra.mxu0 0.0
    %196 = vmatprep.subr.mxu0 0.0
    %197 = vmatpush1.msra.mxu0 0.0
    %198 = vmatprep.subr.mxu0 0.0
    %199 = vmatpush1.msra.mxu0 0.0
    %200 = vmatprep.subr.mxu0 0.0
    %201 = vmatpush1.msra.mxu0 0.0
    %202 = vmatprep.subr.mxu0 0.0
    %203 = vmatpush1.msra.mxu0 0.0
    %204 = vmatprep.subr.mxu0 0.0
    %205 = vmatpush1.msra.mxu0 0.0
    %206 = vmatprep.subr.mxu0 0.0
    %207 = vmatpush1.msra.mxu0 0.0
    %208 = vmatprep.subr.mxu0 0.0
    %209 = vmatpush1.msra.mxu0 0.0
    %210 = vmatprep.subr.mxu0 0.0
    %211 = vmatpush1.msra.mxu0 0.0
    %212 = vmatprep.subr.mxu0 0.0
    %213 = vmatpush1.msra.mxu0 0.0
    %214 = vmatprep.subr.mxu0 0.0
    %215 = vmatpush1.msra.mxu0 0.0
    %216 = vmatprep.subr.mxu0 0.0
    %217 = vmatpush1.msra.mxu0 0.0
    %218 = vmatprep.subr.mxu0 0.0
    %219 = vmatpush1.msra.mxu0 0.0
    %220 = vmatprep.subr.mxu0 0.0
    %221 = vmatpush1.msra.mxu0 0.0
    %222 = vmatprep.subr.mxu0 0.0
    %223 = vmatpush1.msra.mxu0 0.0
    %224 = vmatprep.subr.mxu0 0.0
    %225 = vmatpush1.msra.mxu0 0.0
    %226 = vmatprep.subr.mxu0 0.0
    %227 = vmatpush1.msra.mxu0 0.0
    %228 = vmatprep.subr.mxu0 0.0
    %229 = vmatpush1.msra.mxu0 0.0
    %230 = vmatprep.subr.mxu0 0.0
    %231 = vmatpush1.msra.mxu0 0.0
    %232 = vmatprep.subr.mxu0 0.0
    %233 = vmatpush1.msra.mxu0 0.0
    %234 = vmatprep.subr.mxu0 0.0
    %235 = vmatpush1.msra.mxu0 0.0
    %236 = vmatprep.subr.mxu0 0.0
    %237 = vmatpush1.msra.mxu0 0.0
    %238 = vmatprep.subr.mxu0 0.0
    %239 = vmatpush1.msra.mxu0 0.0
    %240 = vmatprep.mubr.f32.mxu0 0.0
    %241 = vmatmul.mubr.f32.gmra.mrb[0].mxu0 %v83
    %v242 = vpop.f32.mrb[0].mxu0
    %v243 = vadd.f32 %v174, %v242
    %v244 = vpop.f32.mrb[0].mxu0
    %245 = vmatprep.mubr.f32.mxu0 0.0
    %246 = vmatmul.mubr.f32.gmra.mrb[0].mxu0 %v86
    %v247 = vpop.f32.mrb[0].mxu0
    %v248 = vadd.f32 %v174, %v247
    %v249 = vpop.f32.mrb[0].mxu0
    %250 = vdwg.mxu0
    %s251 = scalar_lea.vmem [#allocation5], 64
    %v252 = vld [vmem:[%s251] sm:$0xff]
    %v253 = vld [vmem:[%s251 + $0x8] sm:$0xff]
    %v254 = vld [vmem:[%s251 + $0x10] sm:$0xff]
    %v255 = vld [vmem:[%s251 + $0x18] sm:$0xff]
    %s256 = scalar_lea.vmem %s2, 2
    %v257 = vld [vmem:[%s256] sm:$0x1]
    %v259 = vlaneseq
    %v260 = vshrl.u32 %v259, 7
    %v261 = vsub.s32 0, %v260
    %v262 = vrot.slane %v257, %v261
    %264 = vmatprep.subr.mxu0 0.0
    %265 = vmatpush1.msra.mxu0 %v252
    %266 = vmatprep.subr.mxu0 0.0
    %267 = vmatpush1.msra.mxu0 %v253
    %268 = vmatprep.subr.mxu0 0.0
    %269 = vmatpush1.msra.mxu0 %v254
    %270 = vmatprep.subr.mxu0 0.0
    %271 = vmatpush1.msra.mxu0 %v255
    %272 = vmatprep.subr.mxu0 0.0
    %273 = vmatpush1.msra.mxu0 0.0
    %274 = vmatprep.subr.mxu0 0.0
    %275 = vmatpush1.msra.mxu0 0.0
    %276 = vmatprep.subr.mxu0 0.0
    %277 = vmatpush1.msra.mxu0 0.0
    %278 = vmatprep.subr.mxu0 0.0
    %279 = vmatpush1.msra.mxu0 0.0
    %280 = vmatprep.subr.mxu0 0.0
    %281 = vmatpush1.msra.mxu0 0.0
    %282 = vmatprep.subr.mxu0 0.0
    %283 = vmatpush1.msra.mxu0 0.0
    %284 = vmatprep.subr.mxu0 0.0
    %285 = vmatpush1.msra.mxu0 0.0
    %286 = vmatprep.subr.mxu0 0.0
    %287 = vmatpush1.msra.mxu0 0.0
    %288 = vmatprep.subr.mxu0 0.0
    %289 = vmatpush1.msra.mxu0 0.0
    %290 = vmatprep.subr.mxu0 0.0
    %291 = vmatpush1.msra.mxu0 0.0
    %292 = vmatprep.subr.mxu0 0.0
    %293 = vmatpush1.msra.mxu0 0.0
    %294 = vmatprep.subr.mxu0 0.0
    %295 = vmatpush1.msra.mxu0 0.0
    %296 = vmatprep.subr.mxu0 0.0
    %297 = vmatpush1.msra.mxu0 0.0
    %298 = vmatprep.subr.mxu0 0.0
    %299 = vmatpush1.msra.mxu0 0.0
    %300 = vmatprep.subr.mxu0 0.0
    %301 = vmatpush1.msra.mxu0 0.0
    %302 = vmatprep.subr.mxu0 0.0
    %303 = vmatpush1.msra.mxu0 0.0
    %304 = vmatprep.subr.mxu0 0.0
    %305 = vmatpush1.msra.mxu0 0.0
    %306 = vmatprep.subr.mxu0 0.0
    %307 = vmatpush1.msra.mxu0 0.0
    %308 = vmatprep.subr.mxu0 0.0
    %309 = vmatpush1.msra.mxu0 0.0
    %310 = vmatprep.subr.mxu0 0.0
    %311 = vmatpush1.msra.mxu0 0.0
    %312 = vmatprep.subr.mxu0 0.0
    %313 = vmatpush1.msra.mxu0 0.0
    %314 = vmatprep.subr.mxu0 0.0
    %315 = vmatpush1.msra.mxu0 0.0
    %316 = vmatprep.subr.mxu0 0.0
    %317 = vmatpush1.msra.mxu0 0.0
    %318 = vmatprep.subr.mxu0 0.0
    %319 = vmatpush1.msra.mxu0 0.0
    %320 = vmatprep.subr.mxu0 0.0
    %321 = vmatpush1.msra.mxu0 0.0
    %322 = vmatprep.subr.mxu0 0.0
    %323 = vmatpush1.msra.mxu0 0.0
    %324 = vmatprep.subr.mxu0 0.0
    %325 = vmatpush1.msra.mxu0 0.0
    %326 = vmatprep.subr.mxu0 0.0
    %327 = vmatpush1.msra.mxu0 0.0
    %328 = vmatprep.mubr.f32.mxu0 0.0
    %329 = vmatmul.mubr.f32.gmra.mrb[0].mxu0 %v83
    %v330 = vpop.f32.mrb[0].mxu0
    %v331 = vadd.f32 %v262, %v330
    %v332 = vpop.f32.mrb[0].mxu0
    %333 = vmatprep.mubr.f32.mxu0 0.0
    %334 = vmatmul.mubr.f32.gmra.mrb[0].mxu0 %v86
    %v335 = vpop.f32.mrb[0].mxu0
    %v336 = vadd.f32 %v262, %v335
    %v337 = vpop.f32.mrb[0].mxu0
    %338 = vdwg.mxu0
    %vm339 = vcmask 64512
    %v341 = vsel %vm339, %v155, 0
    %v344 = vsel %vm339, %v243, 0
    %346 = vmatprep.subr.mxu0 0.0
    %347 = vmatpush1.xpose.msra.mxu0 %v344
    %348 = vmatprep.subr.mxu0 0.0
    %349 = vmatpush1.xpose.msra.mxu0 0.0
    %350 = vmatprep.subr.mxu0 0.0
    %351 = vmatpush1.xpose.msra.mxu0 0.0
    %352 = vmatprep.subr.mxu0 0.0
    %353 = vmatpush1.xpose.msra.mxu0 0.0
    %354 = vmatprep.subr.mxu0 0.0
    %355 = vmatpush1.xpose.msra.mxu0 0.0
    %356 = vmatprep.subr.mxu0 0.0
    %357 = vmatpush1.xpose.msra.mxu0 0.0
    %358 = vmatprep.subr.mxu0 0.0
    %359 = vmatpush1.xpose.msra.mxu0 0.0
    %360 = vmatprep.subr.mxu0 0.0
    %361 = vmatpush1.xpose.msra.mxu0 0.0
    %362 = vmatprep.subr.mxu0 0.0
    %363 = vmatpush1.xpose.msra.mxu0 0.0
    %364 = vmatprep.subr.mxu0 0.0
    %365 = vmatpush1.xpose.msra.mxu0 0.0
    %366 = vmatprep.subr.mxu0 0.0
    %367 = vmatpush1.xpose.msra.mxu0 0.0
    %368 = vmatprep.subr.mxu0 0.0
    %369 = vmatpush1.xpose.msra.mxu0 0.0
    %370 = vmatprep.subr.mxu0 0.0
    %371 = vmatpush1.xpose.msra.mxu0 0.0
    %372 = vmatprep.subr.mxu0 0.0
    %373 = vmatpush1.xpose.msra.mxu0 0.0
    %374 = vmatprep.subr.mxu0 0.0
    %375 = vmatpush1.xpose.msra.mxu0 0.0
    %376 = vmatprep.subr.mxu0 0.0
    %377 = vmatpush1.xpose.msra.mxu0 0.0
    %378 = vmatprep.subr.mxu0 0.0
    %379 = vmatpush1.xpose.msra.mxu0 0.0
    %380 = vmatprep.subr.mxu0 0.0
    %381 = vmatpush1.xpose.msra.mxu0 0.0
    %382 = vmatprep.subr.mxu0 0.0
    %383 = vmatpush1.xpose.msra.mxu0 0.0
    %384 = vmatprep.subr.mxu0 0.0
    %385 = vmatpush1.xpose.msra.mxu0 0.0
    %386 = vmatprep.subr.mxu0 0.0
    %387 = vmatpush1.xpose.msra.mxu0 0.0
    %388 = vmatprep.subr.mxu0 0.0
    %389 = vmatpush1.xpose.msra.mxu0 0.0
    %390 = vmatprep.subr.mxu0 0.0
    %391 = vmatpush1.xpose.msra.mxu0 0.0
    %392 = vmatprep.subr.mxu0 0.0
    %393 = vmatpush1.xpose.msra.mxu0 0.0
    %394 = vmatprep.subr.mxu0 0.0
    %395 = vmatpush1.xpose.msra.mxu0 0.0
    %396 = vmatprep.subr.mxu0 0.0
    %397 = vmatpush1.xpose.msra.mxu0 0.0
    %398 = vmatprep.subr.mxu0 0.0
    %399 = vmatpush1.xpose.msra.mxu0 0.0
    %400 = vmatprep.subr.mxu0 0.0
    %401 = vmatpush1.xpose.msra.mxu0 0.0
    %402 = vmatprep.subr.mxu0 0.0
    %403 = vmatpush1.xpose.msra.mxu0 0.0
    %404 = vmatprep.subr.mxu0 0.0
    %405 = vmatpush1.xpose.msra.mxu0 0.0
    %406 = vmatprep.subr.mxu0 0.0
    %407 = vmatpush1.xpose.msra.mxu0 0.0
    %408 = vmatprep.subr.mxu0 0.0
    %409 = vmatpush1.xpose.msra.mxu0 0.0
    %410 = vmatprep.mubr.f32.mxu0 0.0
    %411 = vmatmul.mubr.f32.gmra.mrb[0].mxu0 %v341
    %v412 = vpop.f32.mrb[0].mxu0
    %v413 = vadd.f32 0.0, %v412
    %v414 = vpop.f32.mrb[0].mxu0
    %415 = vdwg.mxu0
    %v417 = vsel %vm339, %v160, 0
    %v420 = vsel %vm339, %v248, 0
    %422 = vmatprep.subr.mxu0 0.0
    %423 = vmatpush1.xpose.msra.mxu0 %v420
    %424 = vmatprep.subr.mxu0 0.0
    %425 = vmatpush1.xpose.msra.mxu0 0.0
    %426 = vmatprep.subr.mxu0 0.0
    %427 = vmatpush1.xpose.msra.mxu0 0.0
    %428 = vmatprep.subr.mxu0 0.0
    %429 = vmatpush1.xpose.msra.mxu0 0.0
    %430 = vmatprep.subr.mxu0 0.0
    %431 = vmatpush1.xpose.msra.mxu0 0.0
    %432 = vmatprep.subr.mxu0 0.0
    %433 = vmatpush1.xpose.msra.mxu0 0.0
    %434 = vmatprep.subr.mxu0 0.0
    %435 = vmatpush1.xpose.msra.mxu0 0.0
    %436 = vmatprep.subr.mxu0 0.0
    %437 = vmatpush1.xpose.msra.mxu0 0.0
    %438 = vmatprep.subr.mxu0 0.0
    %439 = vmatpush1.xpose.msra.mxu0 0.0
    %440 = vmatprep.subr.mxu0 0.0
    %441 = vmatpush1.xpose.msra.mxu0 0.0
    %442 = vmatprep.subr.mxu0 0.0
    %443 = vmatpush1.xpose.msra.mxu0 0.0
    %444 = vmatprep.subr.mxu0 0.0
    %445 = vmatpush1.xpose.msra.mxu0 0.0
    %446 = vmatprep.subr.mxu0 0.0
    %447 = vmatpush1.xpose.msra.mxu0 0.0
    %448 = vmatprep.subr.mxu0 0.0
    %449 = vmatpush1.xpose.msra.mxu0 0.0
    %450 = vmatprep.subr.mxu0 0.0
    %451 = vmatpush1.xpose.msra.mxu0 0.0
    %452 = vmatprep.subr.mxu0 0.0
    %453 = vmatpush1.xpose.msra.mxu0 0.0
    %454 = vmatprep.subr.mxu0 0.0
    %455 = vmatpush1.xpose.msra.mxu0 0.0
    %456 = vmatprep.subr.mxu0 0.0
    %457 = vmatpush1.xpose.msra.mxu0 0.0
    %458 = vmatprep.subr.mxu0 0.0
    %459 = vmatpush1.xpose.msra.mxu0 0.0
    %460 = vmatprep.subr.mxu0 0.0
    %461 = vmatpush1.xpose.msra.mxu0 0.0
    %462 = vmatprep.subr.mxu0 0.0
    %463 = vmatpush1.xpose.msra.mxu0 0.0
    %464 = vmatprep.subr.mxu0 0.0
    %465 = vmatpush1.xpose.msra.mxu0 0.0
    %466 = vmatprep.subr.mxu0 0.0
    %467 = vmatpush1.xpose.msra.mxu0 0.0
    %468 = vmatprep.subr.mxu0 0.0
    %469 = vmatpush1.xpose.msra.mxu0 0.0
    %470 = vmatprep.subr.mxu0 0.0
    %471 = vmatpush1.xpose.msra.mxu0 0.0
    %472 = vmatprep.subr.mxu0 0.0
    %473 = vmatpush1.xpose.msra.mxu0 0.0
    %474 = vmatprep.subr.mxu0 0.0
    %475 = vmatpush1.xpose.msra.mxu0 0.0
    %476 = vmatprep.subr.mxu0 0.0
    %477 = vmatpush1.xpose.msra.mxu0 0.0
    %478 = vmatprep.subr.mxu0 0.0
    %479 = vmatpush1.xpose.msra.mxu0 0.0
    %480 = vmatprep.subr.mxu0 0.0
    %481 = vmatpush1.xpose.msra.mxu0 0.0
    %482 = vmatprep.subr.mxu0 0.0
    %483 = vmatpush1.xpose.msra.mxu0 0.0
    %484 = vmatprep.subr.mxu0 0.0
    %485 = vmatpush1.xpose.msra.mxu0 0.0
    %486 = vmatprep.mubr.f32.mxu0 0.0
    %487 = vmatmul.mubr.f32.gmra.mrb[0].mxu0 %v417
    %v488 = vpop.f32.mrb[0].mxu0
    %v489 = vadd.f32 0.0, %v488
    %v490 = vpop.f32.mrb[0].mxu0
    %491 = vdwg.mxu0
    %v492 = vsel %vm339, %v413, -inf
    %493 = vmax.xlane.f32.xlu0 %v492
    %v494 = vpop.xlane.xlu0 %493
    %v495 = vsel %vm339, %v489, -inf
    %496 = vmax.xlane.f32.xlu0 %v495
    %v497 = vpop.xlane.xlu0 %496
    %v498 = vsub.f32 %v413, %v494
    %v499 = vsub.f32 %v489, %v497
    %v500 = vmul.f32 %v498, 1.442695
    %v501 = vpow.pop %v500
    %v502 = vmul.f32 %v499, 1.442695
    %v503 = vpow.pop %v502
    %v504 = vsel %vm339, %v501, 0.0
    %505 = vadd.xlane.f32.xlu0 %v504
    %v506 = vpop.xlane.xlu0 %505
    %v507 = vsel %vm339, %v503, 0.0
    %508 = vadd.xlane.f32.xlu0 %v507
    %v509 = vpop.xlane.xlu0 %508
    %v510 = vrcp.pop %v506
    %v511 = vrcp.pop %v509
    %v512 = vmul.f32 %v501, %v510
    %v513 = vmul.f32 %v503, %v511
    %v515 = vsel %vm339, %v512, 0
    %517 = vmatprep.subr.mxu0 0.0
    %518 = vmatpush1.msra.mxu0 %v331
    %519 = vmatprep.subr.mxu0 0.0
    %520 = vmatpush1.msra.mxu0 0.0
    %521 = vmatprep.subr.mxu0 0.0
    %522 = vmatpush1.msra.mxu0 0.0
    %523 = vmatprep.subr.mxu0 0.0
    %524 = vmatpush1.msra.mxu0 0.0
    %525 = vmatprep.subr.mxu0 0.0
    %526 = vmatpush1.msra.mxu0 0.0
    %527 = vmatprep.subr.mxu0 0.0
    %528 = vmatpush1.msra.mxu0 0.0
    %529 = vmatprep.subr.mxu0 0.0
    %530 = vmatpush1.msra.mxu0 0.0
    %531 = vmatprep.subr.mxu0 0.0
    %532 = vmatpush1.msra.mxu0 0.0
    %533 = vmatprep.subr.mxu0 0.0
    %534 = vmatpush1.msra.mxu0 0.0
    %535 = vmatprep.subr.mxu0 0.0
    %536 = vmatpush1.msra.mxu0 0.0
    %537 = vmatprep.subr.mxu0 0.0
    %538 = vmatpush1.msra.mxu0 0.0
    %539 = vmatprep.subr.mxu0 0.0
    %540 = vmatpush1.msra.mxu0 0.0
    %541 = vmatprep.subr.mxu0 0.0
    %542 = vmatpush1.msra.mxu0 0.0
    %543 = vmatprep.subr.mxu0 0.0
    %544 = vmatpush1.msra.mxu0 0.0
    %545 = vmatprep.subr.mxu0 0.0
    %546 = vmatpush1.msra.mxu0 0.0
    %547 = vmatprep.subr.mxu0 0.0
    %548 = vmatpush1.msra.mxu0 0.0
    %549 = vmatprep.subr.mxu0 0.0
    %550 = vmatpush1.msra.mxu0 0.0
    %551 = vmatprep.subr.mxu0 0.0
    %552 = vmatpush1.msra.mxu0 0.0
    %553 = vmatprep.subr.mxu0 0.0
    %554 = vmatpush1.msra.mxu0 0.0
    %555 = vmatprep.subr.mxu0 0.0
    %556 = vmatpush1.msra.mxu0 0.0
    %557 = vmatprep.subr.mxu0 0.0
    %558 = vmatpush1.msra.mxu0 0.0
    %559 = vmatprep.subr.mxu0 0.0
    %560 = vmatpush1.msra.mxu0 0.0
    %561 = vmatprep.subr.mxu0 0.0
    %562 = vmatpush1.msra.mxu0 0.0
    %563 = vmatprep.subr.mxu0 0.0
    %564 = vmatpush1.msra.mxu0 0.0
    %565 = vmatprep.subr.mxu0 0.0
    %566 = vmatpush1.msra.mxu0 0.0
    %567 = vmatprep.subr.mxu0 0.0
    %568 = vmatpush1.msra.mxu0 0.0
    %569 = vmatprep.subr.mxu0 0.0
    %570 = vmatpush1.msra.mxu0 0.0
    %571 = vmatprep.subr.mxu0 0.0
    %572 = vmatpush1.msra.mxu0 0.0
    %573 = vmatprep.subr.mxu0 0.0
    %574 = vmatpush1.msra.mxu0 0.0
    %575 = vmatprep.subr.mxu0 0.0
    %576 = vmatpush1.msra.mxu0 0.0
    %577 = vmatprep.subr.mxu0 0.0
    %578 = vmatpush1.msra.mxu0 0.0
    %579 = vmatprep.subr.mxu0 0.0
    %580 = vmatpush1.msra.mxu0 0.0
    %581 = vmatprep.mubr.f32.mxu0 0.0
    %582 = vmatmul.mubr.f32.gmra.mrb[0].mxu0 %v515
    %v583 = vpop.f32.mrb[0].mxu0
    %v584 = vadd.f32 0.0, %v583
    %v585 = vpop.f32.mrb[0].mxu0
    %586 = vdwg.mxu0
    %v588 = vsel %vm339, %v513, 0
    %590 = vmatprep.subr.mxu0 0.0
    %591 = vmatpush1.msra.mxu0 %v336
    %592 = vmatprep.subr.mxu0 0.0
    %593 = vmatpush1.msra.mxu0 0.0
    %594 = vmatprep.subr.mxu0 0.0
    %595 = vmatpush1.msra.mxu0 0.0
    %596 = vmatprep.subr.mxu0 0.0
    %597 = vmatpush1.msra.mxu0 0.0
    %598 = vmatprep.subr.mxu0 0.0
    %599 = vmatpush1.msra.mxu0 0.0
    %600 = vmatprep.subr.mxu0 0.0
    %601 = vmatpush1.msra.mxu0 0.0
    %602 = vmatprep.subr.mxu0 0.0
    %603 = vmatpush1.msra.mxu0 0.0
    %604 = vmatprep.subr.mxu0 0.0
    %605 = vmatpush1.msra.mxu0 0.0
    %606 = vmatprep.subr.mxu0 0.0
    %607 = vmatpush1.msra.mxu0 0.0
    %608 = vmatprep.subr.mxu0 0.0
    %609 = vmatpush1.msra.mxu0 0.0
    %610 = vmatprep.subr.mxu0 0.0
    %611 = vmatpush1.msra.mxu0 0.0
    %612 = vmatprep.subr.mxu0 0.0
    %613 = vmatpush1.msra.mxu0 0.0
    %614 = vmatprep.subr.mxu0 0.0
    %615 = vmatpush1.msra.mxu0 0.0
    %616 = vmatprep.subr.mxu0 0.0
    %617 = vmatpush1.msra.mxu0 0.0
    %618 = vmatprep.subr.mxu0 0.0
    %619 = vmatpush1.msra.mxu0 0.0
    %620 = vmatprep.subr.mxu0 0.0
    %621 = vmatpush1.msra.mxu0 0.0
    %622 = vmatprep.subr.mxu0 0.0
    %623 = vmatpush1.msra.mxu0 0.0
    %624 = vmatprep.subr.mxu0 0.0
    %625 = vmatpush1.msra.mxu0 0.0
    %626 = vmatprep.subr.mxu0 0.0
    %627 = vmatpush1.msra.mxu0 0.0
    %628 = vmatprep.subr.mxu0 0.0
    %629 = vmatpush1.msra.mxu0 0.0
    %630 = vmatprep.subr.mxu0 0.0
    %631 = vmatpush1.msra.mxu0 0.0
    %632 = vmatprep.subr.mxu0 0.0
    %633 = vmatpush1.msra.mxu0 0.0
    %634 = vmatprep.subr.mxu0 0.0
    %635 = vmatpush1.msra.mxu0 0.0
    %636 = vmatprep.subr.mxu0 0.0
    %637 = vmatpush1.msra.mxu0 0.0
    %638 = vmatprep.subr.mxu0 0.0
    %639 = vmatpush1.msra.mxu0 0.0
    %640 = vmatprep.subr.mxu0 0.0
    %641 = vmatpush1.msra.mxu0 0.0
    %642 = vmatprep.subr.mxu0 0.0
    %643 = vmatpush1.msra.mxu0 0.0
    %644 = vmatprep.subr.mxu0 0.0
    %645 = vmatpush1.msra.mxu0 0.0
    %646 = vmatprep.subr.mxu0 0.0
    %647 = vmatpush1.msra.mxu0 0.0
    %648 = vmatprep.subr.mxu0 0.0
    %649 = vmatpush1.msra.mxu0 0.0
    %650 = vmatprep.subr.mxu0 0.0
    %651 = vmatpush1.msra.mxu0 0.0
    %652 = vmatprep.subr.mxu0 0.0
    %653 = vmatpush1.msra.mxu0 0.0
    %654 = vmatprep.mubr.f32.mxu0 0.0
    %655 = vmatmul.mubr.f32.gmra.mrb[0].mxu0 %v588
    %v656 = vpop.f32.mrb[0].mxu0
    %v657 = vadd.f32 0.0, %v656
    %v658 = vpop.f32.mrb[0].mxu0
    %659 = vdwg.mxu0
    %660 = vrot.lane.b32.xlu0 %v155, 120
    %v661 = vpop.permute.xlu0 %660
    %662 = vrot.lane.b32.xlu0 %v243, 120
    %v663 = vpop.permute.xlu0 %662
    %v664 = vsel %vm339, %v661, 0
    %v666 = vsel %vm339, %v663, 0
    %668 = vmatprep.subr.mxu0 0.0
    %669 = vmatpush1.xpose.msra.mxu0 %v666
    %670 = vmatprep.subr.mxu0 0.0
    %671 = vmatpush1.xpose.msra.mxu0 0.0
    %672 = vmatprep.subr.mxu0 0.0
    %673 = vmatpush1.xpose.msra.mxu0 0.0
    %674 = vmatprep.subr.mxu0 0.0
    %675 = vmatpush1.xpose.msra.mxu0 0.0
    %676 = vmatprep.subr.mxu0 0.0
    %677 = vmatpush1.xpose.msra.mxu0 0.0
    %678 = vmatprep.subr.mxu0 0.0
    %679 = vmatpush1.xpose.msra.mxu0 0.0
    %680 = vmatprep.subr.mxu0 0.0
    %681 = vmatpush1.xpose.msra.mxu0 0.0
    %682 = vmatprep.subr.mxu0 0.0
    %683 = vmatpush1.xpose.msra.mxu0 0.0
    %684 = vmatprep.subr.mxu0 0.0
    %685 = vmatpush1.xpose.msra.mxu0 0.0
    %686 = vmatprep.subr.mxu0 0.0
    %687 = vmatpush1.xpose.msra.mxu0 0.0
    %688 = vmatprep.subr.mxu0 0.0
    %689 = vmatpush1.xpose.msra.mxu0 0.0
    %690 = vmatprep.subr.mxu0 0.0
    %691 = vmatpush1.xpose.msra.mxu0 0.0
    %692 = vmatprep.subr.mxu0 0.0
    %693 = vmatpush1.xpose.msra.mxu0 0.0
    %694 = vmatprep.subr.mxu0 0.0
    %695 = vmatpush1.xpose.msra.mxu0 0.0
    %696 = vmatprep.subr.mxu0 0.0
    %697 = vmatpush1.xpose.msra.mxu0 0.0
    %698 = vmatprep.subr.mxu0 0.0
    %699 = vmatpush1.xpose.msra.mxu0 0.0
    %700 = vmatprep.subr.mxu0 0.0
    %701 = vmatpush1.xpose.msra.mxu0 0.0
    %702 = vmatprep.subr.mxu0 0.0
    %703 = vmatpush1.xpose.msra.mxu0 0.0
    %704 = vmatprep.subr.mxu0 0.0
    %705 = vmatpush1.xpose.msra.mxu0 0.0
    %706 = vmatprep.subr.mxu0 0.0
    %707 = vmatpush1.xpose.msra.mxu0 0.0
    %708 = vmatprep.subr.mxu0 0.0
    %709 = vmatpush1.xpose.msra.mxu0 0.0
    %710 = vmatprep.subr.mxu0 0.0
    %711 = vmatpush1.xpose.msra.mxu0 0.0
    %712 = vmatprep.subr.mxu0 0.0
    %713 = vmatpush1.xpose.msra.mxu0 0.0
    %714 = vmatprep.subr.mxu0 0.0
    %715 = vmatpush1.xpose.msra.mxu0 0.0
    %716 = vmatprep.subr.mxu0 0.0
    %717 = vmatpush1.xpose.msra.mxu0 0.0
    %718 = vmatprep.subr.mxu0 0.0
    %719 = vmatpush1.xpose.msra.mxu0 0.0
    %720 = vmatprep.subr.mxu0 0.0
    %721 = vmatpush1.xpose.msra.mxu0 0.0
    %722 = vmatprep.subr.mxu0 0.0
    %723 = vmatpush1.xpose.msra.mxu0 0.0
    %724 = vmatprep.subr.mxu0 0.0
    %725 = vmatpush1.xpose.msra.mxu0 0.0
    %726 = vmatprep.subr.mxu0 0.0
    %727 = vmatpush1.xpose.msra.mxu0 0.0
    %728 = vmatprep.subr.mxu0 0.0
    %729 = vmatpush1.xpose.msra.mxu0 0.0
    %730 = vmatprep.subr.mxu0 0.0
    %731 = vmatpush1.xpose.msra.mxu0 0.0
    %732 = vmatprep.mubr.f32.mxu0 0.0
    %733 = vmatmul.mubr.f32.gmra.mrb[0].mxu0 %v664
    %v734 = vpop.f32.mrb[0].mxu0
    %v735 = vadd.f32 0.0, %v734
    %v736 = vpop.f32.mrb[0].mxu0
    %737 = vdwg.mxu0
    %738 = vrot.lane.b32.xlu0 %v160, 120
    %v739 = vpop.permute.xlu0 %738
    %740 = vrot.lane.b32.xlu0 %v248, 120
    %v741 = vpop.permute.xlu0 %740
    %v742 = vsel %vm339, %v739, 0
    %v744 = vsel %vm339, %v741, 0
    %746 = vmatprep.subr.mxu0 0.0
    %747 = vmatpush1.xpose.msra.mxu0 %v744
    %748 = vmatprep.subr.mxu0 0.0
    %749 = vmatpush1.xpose.msra.mxu0 0.0
    %750 = vmatprep.subr.mxu0 0.0
    %751 = vmatpush1.xpose.msra.mxu0 0.0
    %752 = vmatprep.subr.mxu0 0.0
    %753 = vmatpush1.xpose.msra.mxu0 0.0
    %754 = vmatprep.subr.mxu0 0.0
    %755 = vmatpush1.xpose.msra.mxu0 0.0
    %756 = vmatprep.subr.mxu0 0.0
    %757 = vmatpush1.xpose.msra.mxu0 0.0
    %758 = vmatprep.subr.mxu0 0.0
    %759 = vmatpush1.xpose.msra.mxu0 0.0
    %760 = vmatprep.subr.mxu0 0.0
    %761 = vmatpush1.xpose.msra.mxu0 0.0
    %762 = vmatprep.subr.mxu0 0.0
    %763 = vmatpush1.xpose.msra.mxu0 0.0
    %764 = vmatprep.subr.mxu0 0.0
    %765 = vmatpush1.xpose.msra.mxu0 0.0
    %766 = vmatprep.subr.mxu0 0.0
    %767 = vmatpush1.xpose.msra.mxu0 0.0
    %768 = vmatprep.subr.mxu0 0.0
    %769 = vmatpush1.xpose.msra.mxu0 0.0
    %770 = vmatprep.subr.mxu0 0.0
    %771 = vmatpush1.xpose.msra.mxu0 0.0
    %772 = vmatprep.subr.mxu0 0.0
    %773 = vmatpush1.xpose.msra.mxu0 0.0
    %774 = vmatprep.subr.mxu0 0.0
    %775 = vmatpush1.xpose.msra.mxu0 0.0
    %776 = vmatprep.subr.mxu0 0.0
    %777 = vmatpush1.xpose.msra.mxu0 0.0
    %778 = vmatprep.subr.mxu0 0.0
    %779 = vmatpush1.xpose.msra.mxu0 0.0
    %780 = vmatprep.subr.mxu0 0.0
    %781 = vmatpush1.xpose.msra.mxu0 0.0
    %782 = vmatprep.subr.mxu0 0.0
    %783 = vmatpush1.xpose.msra.mxu0 0.0
    %784 = vmatprep.subr.mxu0 0.0
    %785 = vmatpush1.xpose.msra.mxu0 0.0
    %786 = vmatprep.subr.mxu0 0.0
    %787 = vmatpush1.xpose.msra.mxu0 0.0
    %788 = vmatprep.subr.mxu0 0.0
    %789 = vmatpush1.xpose.msra.mxu0 0.0
    %790 = vmatprep.subr.mxu0 0.0
    %791 = vmatpush1.xpose.msra.mxu0 0.0
    %792 = vmatprep.subr.mxu0 0.0
    %793 = vmatpush1.xpose.msra.mxu0 0.0
    %794 = vmatprep.subr.mxu0 0.0
    %795 = vmatpush1.xpose.msra.mxu0 0.0
    %796 = vmatprep.subr.mxu0 0.0
    %797 = vmatpush1.xpose.msra.mxu0 0.0
    %798 = vmatprep.subr.mxu0 0.0
    %799 = vmatpush1.xpose.msra.mxu0 0.0
    %800 = vmatprep.subr.mxu0 0.0
    %801 = vmatpush1.xpose.msra.mxu0 0.0
    %802 = vmatprep.subr.mxu0 0.0
    %803 = vmatpush1.xpose.msra.mxu0 0.0
    %804 = vmatprep.subr.mxu0 0.0
    %805 = vmatpush1.xpose.msra.mxu0 0.0
    %806 = vmatprep.subr.mxu0 0.0
    %807 = vmatpush1.xpose.msra.mxu0 0.0
    %808 = vmatprep.subr.mxu0 0.0
    %809 = vmatpush1.xpose.msra.mxu0 0.0
    %810 = vmatprep.mubr.f32.mxu0 0.0
    %811 = vmatmul.mubr.f32.gmra.mrb[0].mxu0 %v742
    %v812 = vpop.f32.mrb[0].mxu0
    %v813 = vadd.f32 0.0, %v812
    %v814 = vpop.f32.mrb[0].mxu0
    %815 = vdwg.mxu0
    %v816 = vsel %vm339, %v735, -inf
    %817 = vmax.xlane.f32.xlu0 %v816
    %v818 = vpop.xlane.xlu0 %817
    %v819 = vsel %vm339, %v813, -inf
    %820 = vmax.xlane.f32.xlu0 %v819
    %v821 = vpop.xlane.xlu0 %820
    %v822 = vsub.f32 %v735, %v818
    %v823 = vsub.f32 %v813, %v821
    %v824 = vmul.f32 %v822, 1.442695
    %v825 = vpow.pop %v824
    %v826 = vmul.f32 %v823, 1.442695
    %v827 = vpow.pop %v826
    %v828 = vsel %vm339, %v825, 0.0
    %829 = vadd.xlane.f32.xlu0 %v828
    %v830 = vpop.xlane.xlu0 %829
    %v831 = vsel %vm339, %v827, 0.0
    %832 = vadd.xlane.f32.xlu0 %v831
    %v833 = vpop.xlane.xlu0 %832
    %v834 = vrcp.pop %v830
    %v835 = vrcp.pop %v833
    %v836 = vmul.f32 %v825, %v834
    %v837 = vmul.f32 %v827, %v835
    %839 = vrot.lane.b32.xlu0 %v331, 120
    %v840 = vpop.permute.xlu0 %839
    %v843 = vsel %vm339, %v836, 0
    %845 = vmatprep.subr.mxu0 0.0
    %846 = vmatpush1.msra.mxu0 %v840
    %847 = vmatprep.subr.mxu0 0.0
    %848 = vmatpush1.msra.mxu0 0.0
    %849 = vmatprep.subr.mxu0 0.0
    %850 = vmatpush1.msra.mxu0 0.0
    %851 = vmatprep.subr.mxu0 0.0
    %852 = vmatpush1.msra.mxu0 0.0
    %853 = vmatprep.subr.mxu0 0.0
    %854 = vmatpush1.msra.mxu0 0.0
    %855 = vmatprep.subr.mxu0 0.0
    %856 = vmatpush1.msra.mxu0 0.0
    %857 = vmatprep.subr.mxu0 0.0
    %858 = vmatpush1.msra.mxu0 0.0
    %859 = vmatprep.subr.mxu0 0.0
    %860 = vmatpush1.msra.mxu0 0.0
    %861 = vmatprep.subr.mxu0 0.0
    %862 = vmatpush1.msra.mxu0 0.0
    %863 = vmatprep.subr.mxu0 0.0
    %864 = vmatpush1.msra.mxu0 0.0
    %865 = vmatprep.subr.mxu0 0.0
    %866 = vmatpush1.msra.mxu0 0.0
    %867 = vmatprep.subr.mxu0 0.0
    %868 = vmatpush1.msra.mxu0 0.0
    %869 = vmatprep.subr.mxu0 0.0
    %870 = vmatpush1.msra.mxu0 0.0
    %871 = vmatprep.subr.mxu0 0.0
    %872 = vmatpush1.msra.mxu0 0.0
    %873 = vmatprep.subr.mxu0 0.0
    %874 = vmatpush1.msra.mxu0 0.0
    %875 = vmatprep.subr.mxu0 0.0
    %876 = vmatpush1.msra.mxu0 0.0
    %877 = vmatprep.subr.mxu0 0.0
    %878 = vmatpush1.msra.mxu0 0.0
    %879 = vmatprep.subr.mxu0 0.0
    %880 = vmatpush1.msra.mxu0 0.0
    %881 = vmatprep.subr.mxu0 0.0
    %882 = vmatpush1.msra.mxu0 0.0
    %883 = vmatprep.subr.mxu0 0.0
    %884 = vmatpush1.msra.mxu0 0.0
    %885 = vmatprep.subr.mxu0 0.0
    %886 = vmatpush1.msra.mxu0 0.0
    %887 = vmatprep.subr.mxu0 0.0
    %888 = vmatpush1.msra.mxu0 0.0
    %889 = vmatprep.subr.mxu0 0.0
    %890 = vmatpush1.msra.mxu0 0.0
    %891 = vmatprep.subr.mxu0 0.0
    %892 = vmatpush1.msra.mxu0 0.0
    %893 = vmatprep.subr.mxu0 0.0
    %894 = vmatpush1.msra.mxu0 0.0
    %895 = vmatprep.subr.mxu0 0.0
    %896 = vmatpush1.msra.mxu0 0.0
    %897 = vmatprep.subr.mxu0 0.0
    %898 = vmatpush1.msra.mxu0 0.0
    %899 = vmatprep.subr.mxu0 0.0
    %900 = vmatpush1.msra.mxu0 0.0
    %901 = vmatprep.subr.mxu0 0.0
    %902 = vmatpush1.msra.mxu0 0.0
    %903 = vmatprep.subr.mxu0 0.0
    %904 = vmatpush1.msra.mxu0 0.0
    %905 = vmatprep.subr.mxu0 0.0
    %906 = vmatpush1.msra.mxu0 0.0
    %907 = vmatprep.subr.mxu0 0.0
    %908 = vmatpush1.msra.mxu0 0.0
    %909 = vmatprep.mubr.f32.mxu0 0.0
    %910 = vmatmul.mubr.f32.gmra.mrb[0].mxu0 %v843
    %v911 = vpop.f32.mrb[0].mxu0
    %v912 = vadd.f32 0.0, %v911
    %v913 = vpop.f32.mrb[0].mxu0
    %914 = vdwg.mxu0
    %916 = vrot.lane.b32.xlu0 %v336, 120
    %v917 = vpop.permute.xlu0 %916
    %v920 = vsel %vm339, %v837, 0
    %922 = vmatprep.subr.mxu0 0.0
    %923 = vmatpush1.msra.mxu0 %v917
    %924 = vmatprep.subr.mxu0 0.0
    %925 = vmatpush1.msra.mxu0 0.0
    %926 = vmatprep.subr.mxu0 0.0
    %927 = vmatpush1.msra.mxu0 0.0
    %928 = vmatprep.subr.mxu0 0.0
    %929 = vmatpush1.msra.mxu0 0.0
    %930 = vmatprep.subr.mxu0 0.0
    %931 = vmatpush1.msra.mxu0 0.0
    %932 = vmatprep.subr.mxu0 0.0
    %933 = vmatpush1.msra.mxu0 0.0
    %934 = vmatprep.subr.mxu0 0.0
    %935 = vmatpush1.msra.mxu0 0.0
    %936 = vmatprep.subr.mxu0 0.0
    %937 = vmatpush1.msra.mxu0 0.0
    %938 = vmatprep.subr.mxu0 0.0
    %939 = vmatpush1.msra.mxu0 0.0
    %940 = vmatprep.subr.mxu0 0.0
    %941 = vmatpush1.msra.mxu0 0.0
    %942 = vmatprep.subr.mxu0 0.0
    %943 = vmatpush1.msra.mxu0 0.0
    %944 = vmatprep.subr.mxu0 0.0
    %945 = vmatpush1.msra.mxu0 0.0
    %946 = vmatprep.subr.mxu0 0.0
    %947 = vmatpush1.msra.mxu0 0.0
    %948 = vmatprep.subr.mxu0 0.0
    %949 = vmatpush1.msra.mxu0 0.0
    %950 = vmatprep.subr.mxu0 0.0
    %951 = vmatpush1.msra.mxu0 0.0
    %952 = vmatprep.subr.mxu0 0.0
    %953 = vmatpush1.msra.mxu0 0.0
    %954 = vmatprep.subr.mxu0 0.0
    %955 = vmatpush1.msra.mxu0 0.0
    %956 = vmatprep.subr.mxu0 0.0
    %957 = vmatpush1.msra.mxu0 0.0
    %958 = vmatprep.subr.mxu0 0.0
    %959 = vmatpush1.msra.mxu0 0.0
    %960 = vmatprep.subr.mxu0 0.0
    %961 = vmatpush1.msra.mxu0 0.0
    %962 = vmatprep.subr.mxu0 0.0
    %963 = vmatpush1.msra.mxu0 0.0
    %964 = vmatprep.subr.mxu0 0.0
    %965 = vmatpush1.msra.mxu0 0.0
    %966 = vmatprep.subr.mxu0 0.0
    %967 = vmatpush1.msra.mxu0 0.0
    %968 = vmatprep.subr.mxu0 0.0
    %969 = vmatpush1.msra.mxu0 0.0
    %970 = vmatprep.subr.mxu0 0.0
    %971 = vmatpush1.msra.mxu0 0.0
    %972 = vmatprep.subr.mxu0 0.0
    %973 = vmatpush1.msra.mxu0 0.0
    %974 = vmatprep.subr.mxu0 0.0
    %975 = vmatpush1.msra.mxu0 0.0
    %976 = vmatprep.subr.mxu0 0.0
    %977 = vmatpush1.msra.mxu0 0.0
    %978 = vmatprep.subr.mxu0 0.0
    %979 = vmatpush1.msra.mxu0 0.0
    %980 = vmatprep.subr.mxu0 0.0
    %981 = vmatpush1.msra.mxu0 0.0
    %982 = vmatprep.subr.mxu0 0.0
    %983 = vmatpush1.msra.mxu0 0.0
    %984 = vmatprep.subr.mxu0 0.0
    %985 = vmatpush1.msra.mxu0 0.0
    %986 = vmatprep.mubr.f32.mxu0 0.0
    %987 = vmatmul.mubr.f32.gmra.mrb[0].mxu0 %v920
    %v988 = vpop.f32.mrb[0].mxu0
    %v989 = vadd.f32 0.0, %v988
    %v990 = vpop.f32.mrb[0].mxu0
    %991 = vdwg.mxu0
    %992 = vrot.lane.b32.xlu0 %v155, 112
    %v993 = vpop.permute.xlu0 %992
    %994 = vrot.lane.b32.xlu0 %v243, 112
    %v995 = vpop.permute.xlu0 %994
    %v996 = vsel %vm339, %v993, 0
    %v998 = vsel %vm339, %v995, 0
    %1000 = vmatprep.subr.mxu0 0.0
    %1001 = vmatpush1.xpose.msra.mxu0 %v998
    %1002 = vmatprep.subr.mxu0 0.0
    %1003 = vmatpush1.xpose.msra.mxu0 0.0
    %1004 = vmatprep.subr.mxu0 0.0
    %1005 = vmatpush1.xpose.msra.mxu0 0.0
    %1006 = vmatprep.subr.mxu0 0.0
    %1007 = vmatpush1.xpose.msra.mxu0 0.0
    %1008 = vmatprep.subr.mxu0 0.0
    %1009 = vmatpush1.xpose.msra.mxu0 0.0
    %1010 = vmatprep.subr.mxu0 0.0
    %1011 = vmatpush1.xpose.msra.mxu0 0.0
    %1012 = vmatprep.subr.mxu0 0.0
    %1013 = vmatpush1.xpose.msra.mxu0 0.0
    %1014 = vmatprep.subr.mxu0 0.0
    %1015 = vmatpush1.xpose.msra.mxu0 0.0
    %1016 = vmatprep.subr.mxu0 0.0
    %1017 = vmatpush1.xpose.msra.mxu0 0.0
    %1018 = vmatprep.subr.mxu0 0.0
    %1019 = vmatpush1.xpose.msra.mxu0 0.0
    %1020 = vmatprep.subr.mxu0 0.0
    %1021 = vmatpush1.xpose.msra.mxu0 0.0
    %1022 = vmatprep.subr.mxu0 0.0
    %1023 = vmatpush1.xpose.msra.mxu0 0.0
    %1024 = vmatprep.subr.mxu0 0.0
    %1025 = vmatpush1.xpose.msra.mxu0 0.0
    %1026 = vmatprep.subr.mxu0 0.0
    %1027 = vmatpush1.xpose.msra.mxu0 0.0
    %1028 = vmatprep.subr.mxu0 0.0
    %1029 = vmatpush1.xpose.msra.mxu0 0.0
    %1030 = vmatprep.subr.mxu0 0.0
    %1031 = vmatpush1.xpose.msra.mxu0 0.0
    %1032 = vmatprep.subr.mxu0 0.0
    %1033 = vmatpush1.xpose.msra.mxu0 0.0
    %1034 = vmatprep.subr.mxu0 0.0
    %1035 = vmatpush1.xpose.msra.mxu0 0.0
    %1036 = vmatprep.subr.mxu0 0.0
    %1037 = vmatpush1.xpose.msra.mxu0 0.0
    %1038 = vmatprep.subr.mxu0 0.0
    %1039 = vmatpush1.xpose.msra.mxu0 0.0
    %1040 = vmatprep.subr.mxu0 0.0
    %1041 = vmatpush1.xpose.msra.mxu0 0.0
    %1042 = vmatprep.subr.mxu0 0.0
    %1043 = vmatpush1.xpose.msra.mxu0 0.0
    %1044 = vmatprep.subr.mxu0 0.0
    %1045 = vmatpush1.xpose.msra.mxu0 0.0
    %1046 = vmatprep.subr.mxu0 0.0
    %1047 = vmatpush1.xpose.msra.mxu0 0.0
    %1048 = vmatprep.subr.mxu0 0.0
    %1049 = vmatpush1.xpose.msra.mxu0 0.0
    %1050 = vmatprep.subr.mxu0 0.0
    %1051 = vmatpush1.xpose.msra.mxu0 0.0
    %1052 = vmatprep.subr.mxu0 0.0
    %1053 = vmatpush1.xpose.msra.mxu0 0.0
    %1054 = vmatprep.subr.mxu0 0.0
    %1055 = vmatpush1.xpose.msra.mxu0 0.0
    %1056 = vmatprep.subr.mxu0 0.0
    %1057 = vmatpush1.xpose.msra.mxu0 0.0
    %1058 = vmatprep.subr.mxu0 0.0
    %1059 = vmatpush1.xpose.msra.mxu0 0.0
    %1060 = vmatprep.subr.mxu0 0.0
    %1061 = vmatpush1.xpose.msra.mxu0 0.0
    %1062 = vmatprep.subr.mxu0 0.0
    %1063 = vmatpush1.xpose.msra.mxu0 0.0
    %1064 = vmatprep.mubr.f32.mxu0 0.0
    %1065 = vmatmul.mubr.f32.gmra.mrb[0].mxu0 %v996
    %v1066 = vpop.f32.mrb[0].mxu0
    %v1067 = vadd.f32 0.0, %v1066
    %v1068 = vpop.f32.mrb[0].mxu0
    %1069 = vdwg.mxu0
    %1070 = vrot.lane.b32.xlu0 %v160, 112
    %v1071 = vpop.permute.xlu0 %1070
    %1072 = vrot.lane.b32.xlu0 %v248, 112
    %v1073 = vpop.permute.xlu0 %1072
    %v1074 = vsel %vm339, %v1071, 0
    %v1076 = vsel %vm339, %v1073, 0
    %1078 = vmatprep.subr.mxu0 0.0
    %1079 = vmatpush1.xpose.msra.mxu0 %v1076
    %1080 = vmatprep.subr.mxu0 0.0
    %1081 = vmatpush1.xpose.msra.mxu0 0.0
    %1082 = vmatprep.subr.mxu0 0.0
    %1083 = vmatpush1.xpose.msra.mxu0 0.0
    %1084 = vmatprep.subr.mxu0 0.0
    %1085 = vmatpush1.xpose.msra.mxu0 0.0
    %1086 = vmatprep.subr.mxu0 0.0
    %1087 = vmatpush1.xpose.msra.mxu0 0.0
    %1088 = vmatprep.subr.mxu0 0.0
    %1089 = vmatpush1.xpose.msra.mxu0 0.0
    %1090 = vmatprep.subr.mxu0 0.0
    %1091 = vmatpush1.xpose.msra.mxu0 0.0
    %1092 = vmatprep.subr.mxu0 0.0
    %1093 = vmatpush1.xpose.msra.mxu0 0.0
    %1094 = vmatprep.subr.mxu0 0.0
    %1095 = vmatpush1.xpose.msra.mxu0 0.0
    %1096 = vmatprep.subr.mxu0 0.0
    %1097 = vmatpush1.xpose.msra.mxu0 0.0
    %1098 = vmatprep.subr.mxu0 0.0
    %1099 = vmatpush1.xpose.msra.mxu0 0.0
    %1100 = vmatprep.subr.mxu0 0.0
    %1101 = vmatpush1.xpose.msra.mxu0 0.0
    %1102 = vmatprep.subr.mxu0 0.0
    %1103 = vmatpush1.xpose.msra.mxu0 0.0
    %1104 = vmatprep.subr.mxu0 0.0
    %1105 = vmatpush1.xpose.msra.mxu0 0.0
    %1106 = vmatprep.subr.mxu0 0.0
    %1107 = vmatpush1.xpose.msra.mxu0 0.0
    %1108 = vmatprep.subr.mxu0 0.0
    %1109 = vmatpush1.xpose.msra.mxu0 0.0
    %1110 = vmatprep.subr.mxu0 0.0
    %1111 = vmatpush1.xpose.msra.mxu0 0.0
    %1112 = vmatprep.subr.mxu0 0.0
    %1113 = vmatpush1.xpose.msra.mxu0 0.0
    %1114 = vmatprep.subr.mxu0 0.0
    %1115 = vmatpush1.xpose.msra.mxu0 0.0
    %1116 = vmatprep.subr.mxu0 0.0
    %1117 = vmatpush1.xpose.msra.mxu0 0.0
    %1118 = vmatprep.subr.mxu0 0.0
    %1119 = vmatpush1.xpose.msra.mxu0 0.0
    %1120 = vmatprep.subr.mxu0 0.0
    %1121 = vmatpush1.xpose.msra.mxu0 0.0
    %1122 = vmatprep.subr.mxu0 0.0
    %1123 = vmatpush1.xpose.msra.mxu0 0.0
    %1124 = vmatprep.subr.mxu0 0.0
    %1125 = vmatpush1.xpose.msra.mxu0 0.0
    %1126 = vmatprep.subr.mxu0 0.0
    %1127 = vmatpush1.xpose.msra.mxu0 0.0
    %1128 = vmatprep.subr.mxu0 0.0
    %1129 = vmatpush1.xpose.msra.mxu0 0.0
    %1130 = vmatprep.subr.mxu0 0.0
    %1131 = vmatpush1.xpose.msra.mxu0 0.0
    %1132 = vmatprep.subr.mxu0 0.0
    %1133 = vmatpush1.xpose.msra.mxu0 0.0
    %1134 = vmatprep.subr.mxu0 0.0
    %1135 = vmatpush1.xpose.msra.mxu0 0.0
    %1136 = vmatprep.subr.mxu0 0.0
    %1137 = vmatpush1.xpose.msra.mxu0 0.0
    %1138 = vmatprep.subr.mxu0 0.0
    %1139 = vmatpush1.xpose.msra.mxu0 0.0
    %1140 = vmatprep.subr.mxu0 0.0
    %1141 = vmatpush1.xpose.msra.mxu0 0.0
    %1142 = vmatprep.mubr.f32.mxu0 0.0
    %1143 = vmatmul.mubr.f32.gmra.mrb[0].mxu0 %v1074
    %v1144 = vpop.f32.mrb[0].mxu0
    %v1145 = vadd.f32 0.0, %v1144
    %v1146 = vpop.f32.mrb[0].mxu0
    %1147 = vdwg.mxu0
    %v1148 = vsel %vm339, %v1067, -inf
    %1149 = vmax.xlane.f32.xlu0 %v1148
    %v1150 = vpop.xlane.xlu0 %1149
    %v1151 = vsel %vm339, %v1145, -inf
    %1152 = vmax.xlane.f32.xlu0 %v1151
    %v1153 = vpop.xlane.xlu0 %1152
    %v1154 = vsub.f32 %v1067, %v1150
    %v1155 = vsub.f32 %v1145, %v1153
    %v1156 = vmul.f32 %v1154, 1.442695
    %v1157 = vpow.pop %v1156
    %v1158 = vmul.f32 %v1155, 1.442695
    %v1159 = vpow.pop %v1158
    %v1160 = vsel %vm339, %v1157, 0.0
    %1161 = vadd.xlane.f32.xlu0 %v1160
    %v1162 = vpop.xlane.xlu0 %1161
    %v1163 = vsel %vm339, %v1159, 0.0
    %1164 = vadd.xlane.f32.xlu0 %v1163
    %v1165 = vpop.xlane.xlu0 %1164
    %v1166 = vrcp.pop %v1162
    %v1167 = vrcp.pop %v1165
    %v1168 = vmul.f32 %v1157, %v1166
    %v1169 = vmul.f32 %v1159, %v1167
    %1170 = vrot.lane.b32.xlu0 %v331, 112
    %v1171 = vpop.permute.xlu0 %1170
    %v1174 = vsel %vm339, %v1168, 0
    %1176 = vmatprep.subr.mxu0 0.0
    %1177 = vmatpush1.msra.mxu0 %v1171
    %1178 = vmatprep.subr.mxu0 0.0
    %1179 = vmatpush1.msra.mxu0 0.0
    %1180 = vmatprep.subr.mxu0 0.0
    %1181 = vmatpush1.msra.mxu0 0.0
    %1182 = vmatprep.subr.mxu0 0.0
    %1183 = vmatpush1.msra.mxu0 0.0
    %1184 = vmatprep.subr.mxu0 0.0
    %1185 = vmatpush1.msra.mxu0 0.0
    %1186 = vmatprep.subr.mxu0 0.0
    %1187 = vmatpush1.msra.mxu0 0.0
    %1188 = vmatprep.subr.mxu0 0.0
    %1189 = vmatpush1.msra.mxu0 0.0
    %1190 = vmatprep.subr.mxu0 0.0
    %1191 = vmatpush1.msra.mxu0 0.0
    %1192 = vmatprep.subr.mxu0 0.0
    %1193 = vmatpush1.msra.mxu0 0.0
    %1194 = vmatprep.subr.mxu0 0.0
    %1195 = vmatpush1.msra.mxu0 0.0
    %1196 = vmatprep.subr.mxu0 0.0
    %1197 = vmatpush1.msra.mxu0 0.0
    %1198 = vmatprep.subr.mxu0 0.0
    %1199 = vmatpush1.msra.mxu0 0.0
    %1200 = vmatprep.subr.mxu0 0.0
    %1201 = vmatpush1.msra.mxu0 0.0
    %1202 = vmatprep.subr.mxu0 0.0
    %1203 = vmatpush1.msra.mxu0 0.0
    %1204 = vmatprep.subr.mxu0 0.0
    %1205 = vmatpush1.msra.mxu0 0.0
    %1206 = vmatprep.subr.mxu0 0.0
    %1207 = vmatpush1.msra.mxu0 0.0
    %1208 = vmatprep.subr.mxu0 0.0
    %1209 = vmatpush1.msra.mxu0 0.0
    %1210 = vmatprep.subr.mxu0 0.0
    %1211 = vmatpush1.msra.mxu0 0.0
    %1212 = vmatprep.subr.mxu0 0.0
    %1213 = vmatpush1.msra.mxu0 0.0
    %1214 = vmatprep.subr.mxu0 0.0
    %1215 = vmatpush1.msra.mxu0 0.0
    %1216 = vmatprep.subr.mxu0 0.0
    %1217 = vmatpush1.msra.mxu0 0.0
    %1218 = vmatprep.subr.mxu0 0.0
    %1219 = vmatpush1.msra.mxu0 0.0
    %1220 = vmatprep.subr.mxu0 0.0
    %1221 = vmatpush1.msra.mxu0 0.0
    %1222 = vmatprep.subr.mxu0 0.0
    %1223 = vmatpush1.msra.mxu0 0.0
    %1224 = vmatprep.subr.mxu0 0.0
    %1225 = vmatpush1.msra.mxu0 0.0
    %1226 = vmatprep.subr.mxu0 0.0
    %1227 = vmatpush1.msra.mxu0 0.0
    %1228 = vmatprep.subr.mxu0 0.0
    %1229 = vmatpush1.msra.mxu0 0.0
    %1230 = vmatprep.subr.mxu0 0.0
    %1231 = vmatpush1.msra.mxu0 0.0
    %1232 = vmatprep.subr.mxu0 0.0
    %1233 = vmatpush1.msra.mxu0 0.0
    %1234 = vmatprep.subr.mxu0 0.0
    %1235 = vmatpush1.msra.mxu0 0.0
    %1236 = vmatprep.subr.mxu0 0.0
    %1237 = vmatpush1.msra.mxu0 0.0
    %1238 = vmatprep.subr.mxu0 0.0
    %1239 = vmatpush1.msra.mxu0 0.0
    %1240 = vmatprep.mubr.f32.mxu0 0.0
    %1241 = vmatmul.mubr.f32.gmra.mrb[0].mxu0 %v1174
    %v1242 = vpop.f32.mrb[0].mxu0
    %v1243 = vadd.f32 0.0, %v1242
    %v1244 = vpop.f32.mrb[0].mxu0
    %1245 = vdwg.mxu0
    %1246 = vrot.lane.b32.xlu0 %v336, 112
    %v1247 = vpop.permute.xlu0 %1246
    %v1250 = vsel %vm339, %v1169, 0
    %1252 = vmatprep.subr.mxu0 0.0
    %1253 = vmatpush1.msra.mxu0 %v1247
    %1254 = vmatprep.subr.mxu0 0.0
    %1255 = vmatpush1.msra.mxu0 0.0
    %1256 = vmatprep.subr.mxu0 0.0
    %1257 = vmatpush1.msra.mxu0 0.0
    %1258 = vmatprep.subr.mxu0 0.0
    %1259 = vmatpush1.msra.mxu0 0.0
    %1260 = vmatprep.subr.mxu0 0.0
    %1261 = vmatpush1.msra.mxu0 0.0
    %1262 = vmatprep.subr.mxu0 0.0
    %1263 = vmatpush1.msra.mxu0 0.0
    %1264 = vmatprep.subr.mxu0 0.0
    %1265 = vmatpush1.msra.mxu0 0.0
    %1266 = vmatprep.subr.mxu0 0.0
    %1267 = vmatpush1.msra.mxu0 0.0
    %1268 = vmatprep.subr.mxu0 0.0
    %1269 = vmatpush1.msra.mxu0 0.0
    %1270 = vmatprep.subr.mxu0 0.0
    %1271 = vmatpush1.msra.mxu0 0.0
    %1272 = vmatprep.subr.mxu0 0.0
    %1273 = vmatpush1.msra.mxu0 0.0
    %1274 = vmatprep.subr.mxu0 0.0
    %1275 = vmatpush1.msra.mxu0 0.0
    %1276 = vmatprep.subr.mxu0 0.0
    %1277 = vmatpush1.msra.mxu0 0.0
    %1278 = vmatprep.subr.mxu0 0.0
    %1279 = vmatpush1.msra.mxu0 0.0
    %1280 = vmatprep.subr.mxu0 0.0
    %1281 = vmatpush1.msra.mxu0 0.0
    %1282 = vmatprep.subr.mxu0 0.0
    %1283 = vmatpush1.msra.mxu0 0.0
    %1284 = vmatprep.subr.mxu0 0.0
    %1285 = vmatpush1.msra.mxu0 0.0
    %1286 = vmatprep.subr.mxu0 0.0
    %1287 = vmatpush1.msra.mxu0 0.0
    %1288 = vmatprep.subr.mxu0 0.0
    %1289 = vmatpush1.msra.mxu0 0.0
    %1290 = vmatprep.subr.mxu0 0.0
    %1291 = vmatpush1.msra.mxu0 0.0
    %1292 = vmatprep.subr.mxu0 0.0
    %1293 = vmatpush1.msra.mxu0 0.0
    %1294 = vmatprep.subr.mxu0 0.0
    %1295 = vmatpush1.msra.mxu0 0.0
    %1296 = vmatprep.subr.mxu0 0.0
    %1297 = vmatpush1.msra.mxu0 0.0
    %1298 = vmatprep.subr.mxu0 0.0
    %1299 = vmatpush1.msra.mxu0 0.0
    %1300 = vmatprep.subr.mxu0 0.0
    %1301 = vmatpush1.msra.mxu0 0.0
    %1302 = vmatprep.subr.mxu0 0.0
    %1303 = vmatpush1.msra.mxu0 0.0
    %1304 = vmatprep.subr.mxu0 0.0
    %1305 = vmatpush1.msra.mxu0 0.0
    %1306 = vmatprep.subr.mxu0 0.0
    %1307 = vmatpush1.msra.mxu0 0.0
    %1308 = vmatprep.subr.mxu0 0.0
    %1309 = vmatpush1.msra.mxu0 0.0
    %1310 = vmatprep.subr.mxu0 0.0
    %1311 = vmatpush1.msra.mxu0 0.0
    %1312 = vmatprep.subr.mxu0 0.0
    %1313 = vmatpush1.msra.mxu0 0.0
    %1314 = vmatprep.subr.mxu0 0.0
    %1315 = vmatpush1.msra.mxu0 0.0
    %1316 = vmatprep.mubr.f32.mxu0 0.0
    %1317 = vmatmul.mubr.f32.gmra.mrb[0].mxu0 %v1250
    %v1318 = vpop.f32.mrb[0].mxu0
    %v1319 = vadd.f32 0.0, %v1318
    %v1320 = vpop.f32.mrb[0].mxu0
    %1321 = vdwg.mxu0
    %1322 = vrot.lane.b32.xlu0 %v155, 104
    %v1323 = vpop.permute.xlu0 %1322
    %1324 = vrot.lane.b32.xlu0 %v243, 104
    %v1325 = vpop.permute.xlu0 %1324
    %v1326 = vsel %vm339, %v1323, 0
    %v1328 = vsel %vm339, %v1325, 0
    %1330 = vmatprep.subr.mxu0 0.0
    %1331 = vmatpush1.xpose.msra.mxu0 %v1328
    %1332 = vmatprep.subr.mxu0 0.0
    %1333 = vmatpush1.xpose.msra.mxu0 0.0
    %1334 = vmatprep.subr.mxu0 0.0
    %1335 = vmatpush1.xpose.msra.mxu0 0.0
    %1336 = vmatprep.subr.mxu0 0.0
    %1337 = vmatpush1.xpose.msra.mxu0 0.0
    %1338 = vmatprep.subr.mxu0 0.0
    %1339 = vmatpush1.xpose.msra.mxu0 0.0
    %1340 = vmatprep.subr.mxu0 0.0
    %1341 = vmatpush1.xpose.msra.mxu0 0.0
    %1342 = vmatprep.subr.mxu0 0.0
    %1343 = vmatpush1.xpose.msra.mxu0 0.0
    %1344 = vmatprep.subr.mxu0 0.0
    %1345 = vmatpush1.xpose.msra.mxu0 0.0
    %1346 = vmatprep.subr.mxu0 0.0
    %1347 = vmatpush1.xpose.msra.mxu0 0.0
    %1348 = vmatprep.subr.mxu0 0.0
    %1349 = vmatpush1.xpose.msra.mxu0 0.0
    %1350 = vmatprep.subr.mxu0 0.0
    %1351 = vmatpush1.xpose.msra.mxu0 0.0
    %1352 = vmatprep.subr.mxu0 0.0
    %1353 = vmatpush1.xpose.msra.mxu0 0.0
    %1354 = vmatprep.subr.mxu0 0.0
    %1355 = vmatpush1.xpose.msra.mxu0 0.0
    %1356 = vmatprep.subr.mxu0 0.0
    %1357 = vmatpush1.xpose.msra.mxu0 0.0
    %1358 = vmatprep.subr.mxu0 0.0
    %1359 = vmatpush1.xpose.msra.mxu0 0.0
    %1360 = vmatprep.subr.mxu0 0.0
    %1361 = vmatpush1.xpose.msra.mxu0 0.0
    %1362 = vmatprep.subr.mxu0 0.0
    %1363 = vmatpush1.xpose.msra.mxu0 0.0
    %1364 = vmatprep.subr.mxu0 0.0
    %1365 = vmatpush1.xpose.msra.mxu0 0.0
    %1366 = vmatprep.subr.mxu0 0.0
    %1367 = vmatpush1.xpose.msra.mxu0 0.0
    %1368 = vmatprep.subr.mxu0 0.0
    %1369 = vmatpush1.xpose.msra.mxu0 0.0
    %1370 = vmatprep.subr.mxu0 0.0
    %1371 = vmatpush1.xpose.msra.mxu0 0.0
    %1372 = vmatprep.subr.mxu0 0.0
    %1373 = vmatpush1.xpose.msra.mxu0 0.0
    %1374 = vmatprep.subr.mxu0 0.0
    %1375 = vmatpush1.xpose.msra.mxu0 0.0
    %1376 = vmatprep.subr.mxu0 0.0
    %1377 = vmatpush1.xpose.msra.mxu0 0.0
    %1378 = vmatprep.subr.mxu0 0.0
    %1379 = vmatpush1.xpose.msra.mxu0 0.0
    %1380 = vmatprep.subr.mxu0 0.0
    %1381 = vmatpush1.xpose.msra.mxu0 0.0
    %1382 = vmatprep.subr.mxu0 0.0
    %1383 = vmatpush1.xpose.msra.mxu0 0.0
    %1384 = vmatprep.subr.mxu0 0.0
    %1385 = vmatpush1.xpose.msra.mxu0 0.0
    %1386 = vmatprep.subr.mxu0 0.0
    %1387 = vmatpush1.xpose.msra.mxu0 0.0
    %1388 = vmatprep.subr.mxu0 0.0
    %1389 = vmatpush1.xpose.msra.mxu0 0.0
    %1390 = vmatprep.subr.mxu0 0.0
    %1391 = vmatpush1.xpose.msra.mxu0 0.0
    %1392 = vmatprep.subr.mxu0 0.0
    %1393 = vmatpush1.xpose.msra.mxu0 0.0
    %1394 = vmatprep.mubr.f32.mxu0 0.0
    %1395 = vmatmul.mubr.f32.gmra.mrb[0].mxu0 %v1326
    %v1396 = vpop.f32.mrb[0].mxu0
    %v1397 = vadd.f32 0.0, %v1396
    %v1398 = vpop.f32.mrb[0].mxu0
    %1399 = vdwg.mxu0
    %1400 = vrot.lane.b32.xlu0 %v160, 104
    %v1401 = vpop.permute.xlu0 %1400
    %1402 = vrot.lane.b32.xlu0 %v248, 104
    %v1403 = vpop.permute.xlu0 %1402
    %v1404 = vsel %vm339, %v1401, 0
    %v1406 = vsel %vm339, %v1403, 0
    %1408 = vmatprep.subr.mxu0 0.0
    %1409 = vmatpush1.xpose.msra.mxu0 %v1406
    %1410 = vmatprep.subr.mxu0 0.0
    %1411 = vmatpush1.xpose.msra.mxu0 0.0
    %1412 = vmatprep.subr.mxu0 0.0
    %1413 = vmatpush1.xpose.msra.mxu0 0.0
    %1414 = vmatprep.subr.mxu0 0.0
    %1415 = vmatpush1.xpose.msra.mxu0 0.0
    %1416 = vmatprep.subr.mxu0 0.0
    %1417 = vmatpush1.xpose.msra.mxu0 0.0
    %1418 = vmatprep.subr.mxu0 0.0
    %1419 = vmatpush1.xpose.msra.mxu0 0.0
    %1420 = vmatprep.subr.mxu0 0.0
    %1421 = vmatpush1.xpose.msra.mxu0 0.0
    %1422 = vmatprep.subr.mxu0 0.0
    %1423 = vmatpush1.xpose.msra.mxu0 0.0
    %1424 = vmatprep.subr.mxu0 0.0
    %1425 = vmatpush1.xpose.msra.mxu0 0.0
    %1426 = vmatprep.subr.mxu0 0.0
    %1427 = vmatpush1.xpose.msra.mxu0 0.0
    %1428 = vmatprep.subr.mxu0 0.0
    %1429 = vmatpush1.xpose.msra.mxu0 0.0
    %1430 = vmatprep.subr.mxu0 0.0
    %1431 = vmatpush1.xpose.msra.mxu0 0.0
    %1432 = vmatprep.subr.mxu0 0.0
    %1433 = vmatpush1.xpose.msra.mxu0 0.0
    %1434 = vmatprep.subr.mxu0 0.0
    %1435 = vmatpush1.xpose.msra.mxu0 0.0
    %1436 = vmatprep.subr.mxu0 0.0
    %1437 = vmatpush1.xpose.msra.mxu0 0.0
    %1438 = vmatprep.subr.mxu0 0.0
    %1439 = vmatpush1.xpose.msra.mxu0 0.0
    %1440 = vmatprep.subr.mxu0 0.0
    %1441 = vmatpush1.xpose.msra.mxu0 0.0
    %1442 = vmatprep.subr.mxu0 0.0
    %1443 = vmatpush1.xpose.msra.mxu0 0.0
    %1444 = vmatprep.subr.mxu0 0.0
    %1445 = vmatpush1.xpose.msra.mxu0 0.0
    %1446 = vmatprep.subr.mxu0 0.0
    %1447 = vmatpush1.xpose.msra.mxu0 0.0
    %1448 = vmatprep.subr.mxu0 0.0
    %1449 = vmatpush1.xpose.msra.mxu0 0.0
    %1450 = vmatprep.subr.mxu0 0.0
    %1451 = vmatpush1.xpose.msra.mxu0 0.0
    %1452 = vmatprep.subr.mxu0 0.0
    %1453 = vmatpush1.xpose.msra.mxu0 0.0
    %1454 = vmatprep.subr.mxu0 0.0
    %1455 = vmatpush1.xpose.msra.mxu0 0.0
    %1456 = vmatprep.subr.mxu0 0.0
    %1457 = vmatpush1.xpose.msra.mxu0 0.0
    %1458 = vmatprep.subr.mxu0 0.0
    %1459 = vmatpush1.xpose.msra.mxu0 0.0
    %1460 = vmatprep.subr.mxu0 0.0
    %1461 = vmatpush1.xpose.msra.mxu0 0.0
    %1462 = vmatprep.subr.mxu0 0.0
    %1463 = vmatpush1.xpose.msra.mxu0 0.0
    %1464 = vmatprep.subr.mxu0 0.0
    %1465 = vmatpush1.xpose.msra.mxu0 0.0
    %1466 = vmatprep.subr.mxu0 0.0
    %1467 = vmatpush1.xpose.msra.mxu0 0.0
    %1468 = vmatprep.subr.mxu0 0.0
    %1469 = vmatpush1.xpose.msra.mxu0 0.0
    %1470 = vmatprep.subr.mxu0 0.0
    %1471 = vmatpush1.xpose.msra.mxu0 0.0
    %1472 = vmatprep.mubr.f32.mxu0 0.0
    %1473 = vmatmul.mubr.f32.gmra.mrb[0].mxu0 %v1404
    %v1474 = vpop.f32.mrb[0].mxu0
    %v1475 = vadd.f32 0.0, %v1474
    %v1476 = vpop.f32.mrb[0].mxu0
    %1477 = vdwg.mxu0
    %v1478 = vsel %vm339, %v1397, -inf
    %1479 = vmax.xlane.f32.xlu0 %v1478
    %v1480 = vpop.xlane.xlu0 %1479
    %v1481 = vsel %vm339, %v1475, -inf
    %1482 = vmax.xlane.f32.xlu0 %v1481
    %v1483 = vpop.xlane.xlu0 %1482
    %v1484 = vsub.f32 %v1397, %v1480
    %v1485 = vsub.f32 %v1475, %v1483
    %v1486 = vmul.f32 %v1484, 1.442695
    %v1487 = vpow.pop %v1486
    %v1488 = vmul.f32 %v1485, 1.442695
    %v1489 = vpow.pop %v1488
    %v1490 = vsel %vm339, %v1487, 0.0
    %1491 = vadd.xlane.f32.xlu0 %v1490
    %v1492 = vpop.xlane.xlu0 %1491
    %v1493 = vsel %vm339, %v1489, 0.0
    %1494 = vadd.xlane.f32.xlu0 %v1493
    %v1495 = vpop.xlane.xlu0 %1494
    %v1496 = vrcp.pop %v1492
    %v1497 = vrcp.pop %v1495
    %v1498 = vmul.f32 %v1487, %v1496
    %v1499 = vmul.f32 %v1489, %v1497
    %1500 = vrot.lane.b32.xlu0 %v331, 104
    %v1501 = vpop.permute.xlu0 %1500
    %v1504 = vsel %vm339, %v1498, 0
    %1506 = vmatprep.subr.mxu0 0.0
    %1507 = vmatpush1.msra.mxu0 %v1501
    %1508 = vmatprep.subr.mxu0 0.0
    %1509 = vmatpush1.msra.mxu0 0.0
    %1510 = vmatprep.subr.mxu0 0.0
    %1511 = vmatpush1.msra.mxu0 0.0
    %1512 = vmatprep.subr.mxu0 0.0
    %1513 = vmatpush1.msra.mxu0 0.0
    %1514 = vmatprep.subr.mxu0 0.0
    %1515 = vmatpush1.msra.mxu0 0.0
    %1516 = vmatprep.subr.mxu0 0.0
    %1517 = vmatpush1.msra.mxu0 0.0
    %1518 = vmatprep.subr.mxu0 0.0
    %1519 = vmatpush1.msra.mxu0 0.0
    %1520 = vmatprep.subr.mxu0 0.0
    %1521 = vmatpush1.msra.mxu0 0.0
    %1522 = vmatprep.subr.mxu0 0.0
    %1523 = vmatpush1.msra.mxu0 0.0
    %1524 = vmatprep.subr.mxu0 0.0
    %1525 = vmatpush1.msra.mxu0 0.0
    %1526 = vmatprep.subr.mxu0 0.0
    %1527 = vmatpush1.msra.mxu0 0.0
    %1528 = vmatprep.subr.mxu0 0.0
    %1529 = vmatpush1.msra.mxu0 0.0
    %1530 = vmatprep.subr.mxu0 0.0
    %1531 = vmatpush1.msra.mxu0 0.0
    %1532 = vmatprep.subr.mxu0 0.0
    %1533 = vmatpush1.msra.mxu0 0.0
    %1534 = vmatprep.subr.mxu0 0.0
    %1535 = vmatpush1.msra.mxu0 0.0
    %1536 = vmatprep.subr.mxu0 0.0
    %1537 = vmatpush1.msra.mxu0 0.0
    %1538 = vmatprep.subr.mxu0 0.0
    %1539 = vmatpush1.msra.mxu0 0.0
    %1540 = vmatprep.subr.mxu0 0.0
    %1541 = vmatpush1.msra.mxu0 0.0
    %1542 = vmatprep.subr.mxu0 0.0
    %1543 = vmatpush1.msra.mxu0 0.0
    %1544 = vmatprep.subr.mxu0 0.0
    %1545 = vmatpush1.msra.mxu0 0.0
    %1546 = vmatprep.subr.mxu0 0.0
    %1547 = vmatpush1.msra.mxu0 0.0
    %1548 = vmatprep.subr.mxu0 0.0
    %1549 = vmatpush1.msra.mxu0 0.0
    %1550 = vmatprep.subr.mxu0 0.0
    %1551 = vmatpush1.msra.mxu0 0.0
    %1552 = vmatprep.subr.mxu0 0.0
    %1553 = vmatpush1.msra.mxu0 0.0
    %1554 = vmatprep.subr.mxu0 0.0
    %1555 = vmatpush1.msra.mxu0 0.0
    %1556 = vmatprep.subr.mxu0 0.0
    %1557 = vmatpush1.msra.mxu0 0.0
    %1558 = vmatprep.subr.mxu0 0.0
    %1559 = vmatpush1.msra.mxu0 0.0
    %1560 = vmatprep.subr.mxu0 0.0
    %1561 = vmatpush1.msra.mxu0 0.0
    %1562 = vmatprep.subr.mxu0 0.0
    %1563 = vmatpush1.msra.mxu0 0.0
    %1564 = vmatprep.subr.mxu0 0.0
    %1565 = vmatpush1.msra.mxu0 0.0
    %1566 = vmatprep.subr.mxu0 0.0
    %1567 = vmatpush1.msra.mxu0 0.0
    %1568 = vmatprep.subr.mxu0 0.0
    %1569 = vmatpush1.msra.mxu0 0.0
    %1570 = vmatprep.mubr.f32.mxu0 0.0
    %1571 = vmatmul.mubr.f32.gmra.mrb[0].mxu0 %v1504
    %v1572 = vpop.f32.mrb[0].mxu0
    %v1573 = vadd.f32 0.0, %v1572
    %v1574 = vpop.f32.mrb[0].mxu0
    %1575 = vdwg.mxu0
    %1576 = vrot.lane.b32.xlu0 %v336, 104
    %v1577 = vpop.permute.xlu0 %1576
    %v1580 = vsel %vm339, %v1499, 0
    %1582 = vmatprep.subr.mxu0 0.0
    %1583 = vmatpush1.msra.mxu0 %v1577
    %1584 = vmatprep.subr.mxu0 0.0
    %1585 = vmatpush1.msra.mxu0 0.0
    %1586 = vmatprep.subr.mxu0 0.0
    %1587 = vmatpush1.msra.mxu0 0.0
    %1588 = vmatprep.subr.mxu0 0.0
    %1589 = vmatpush1.msra.mxu0 0.0
    %1590 = vmatprep.subr.mxu0 0.0
    %1591 = vmatpush1.msra.mxu0 0.0
    %1592 = vmatprep.subr.mxu0 0.0
    %1593 = vmatpush1.msra.mxu0 0.0
    %1594 = vmatprep.subr.mxu0 0.0
    %1595 = vmatpush1.msra.mxu0 0.0
    %1596 = vmatprep.subr.mxu0 0.0
    %1597 = vmatpush1.msra.mxu0 0.0
    %1598 = vmatprep.subr.mxu0 0.0
    %1599 = vmatpush1.msra.mxu0 0.0
    %1600 = vmatprep.subr.mxu0 0.0
    %1601 = vmatpush1.msra.mxu0 0.0
    %1602 = vmatprep.subr.mxu0 0.0
    %1603 = vmatpush1.msra.mxu0 0.0
    %1604 = vmatprep.subr.mxu0 0.0
    %1605 = vmatpush1.msra.mxu0 0.0
    %1606 = vmatprep.subr.mxu0 0.0
    %1607 = vmatpush1.msra.mxu0 0.0
    %1608 = vmatprep.subr.mxu0 0.0
    %1609 = vmatpush1.msra.mxu0 0.0
    %1610 = vmatprep.subr.mxu0 0.0
    %1611 = vmatpush1.msra.mxu0 0.0
    %1612 = vmatprep.subr.mxu0 0.0
    %1613 = vmatpush1.msra.mxu0 0.0
    %1614 = vmatprep.subr.mxu0 0.0
    %1615 = vmatpush1.msra.mxu0 0.0
    %1616 = vmatprep.subr.mxu0 0.0
    %1617 = vmatpush1.msra.mxu0 0.0
    %1618 = vmatprep.subr.mxu0 0.0
    %1619 = vmatpush1.msra.mxu0 0.0
    %1620 = vmatprep.subr.mxu0 0.0
    %1621 = vmatpush1.msra.mxu0 0.0
    %1622 = vmatprep.subr.mxu0 0.0
    %1623 = vmatpush1.msra.mxu0 0.0
    %1624 = vmatprep.subr.mxu0 0.0
    %1625 = vmatpush1.msra.mxu0 0.0
    %1626 = vmatprep.subr.mxu0 0.0
    %1627 = vmatpush1.msra.mxu0 0.0
    %1628 = vmatprep.subr.mxu0 0.0
    %1629 = vmatpush1.msra.mxu0 0.0
    %1630 = vmatprep.subr.mxu0 0.0
    %1631 = vmatpush1.msra.mxu0 0.0
    %1632 = vmatprep.subr.mxu0 0.0
    %1633 = vmatpush1.msra.mxu0 0.0
    %1634 = vmatprep.subr.mxu0 0.0
    %1635 = vmatpush1.msra.mxu0 0.0
    %1636 = vmatprep.subr.mxu0 0.0
    %1637 = vmatpush1.msra.mxu0 0.0
    %1638 = vmatprep.subr.mxu0 0.0
    %1639 = vmatpush1.msra.mxu0 0.0
    %1640 = vmatprep.subr.mxu0 0.0
    %1641 = vmatpush1.msra.mxu0 0.0
    %1642 = vmatprep.subr.mxu0 0.0
    %1643 = vmatpush1.msra.mxu0 0.0
    %1644 = vmatprep.subr.mxu0 0.0
    %1645 = vmatpush1.msra.mxu0 0.0
    %1646 = vmatprep.mubr.f32.mxu0 0.0
    %1647 = vmatmul.mubr.f32.gmra.mrb[0].mxu0 %v1580
    %v1648 = vpop.f32.mrb[0].mxu0
    %v1649 = vadd.f32 0.0, %v1648
    %v1650 = vpop.f32.mrb[0].mxu0
    %1651 = vdwg.mxu0
    %1654 = vrot.lane.b32.xlu0 %v912, 8
    %v1655 = vpop.permute.xlu0 %1654
    %1656 = vrot.lane.b32.xlu0 %v989, 8
    %v1657 = vpop.permute.xlu0 %1656
    %1662 = vrot.lane.b32.xlu0 %v1243, 16
    %v1663 = vpop.permute.xlu0 %1662
    %1664 = vrot.lane.b32.xlu0 %v1319, 16
    %v1665 = vpop.permute.xlu0 %1664
    %1670 = vrot.lane.b32.xlu0 %v1573, 24
    %v1671 = vpop.permute.xlu0 %1670
    %1672 = vrot.lane.b32.xlu0 %v1649, 24
    %v1673 = vpop.permute.xlu0 %1672
    %v1676 = vsel %vm339, %v584, %v1655
    %v1677 = vsel %vm339, %v657, %v1657
    %vm1678 = vcmask 130048
    %v1679 = vsel %vm1678, %v1676, %v1663
    %v1680 = vsel %vm1678, %v1677, %v1665
    %vm1681 = vcmask 195584
    %v1682 = vsel %vm1681, %v1679, %v1671
    %v1683 = vsel %vm1681, %v1680, %v1673
    %v1684 = vld [vmem:[#allocation7] sm:$0xff]
    %v1685 = vld [vmem:[#allocation7 + $0x8] sm:$0xff]
    %v1686 = vld [vmem:[#allocation7 + $0x10] sm:$0xff]
    %v1687 = vld [vmem:[#allocation7 + $0x18] sm:$0xff]
    %v1688 = vld [vmem:[%s4] sm:$0x1]
    %v1690 = vlaneseq
    %v1691 = vshrl.u32 %v1690, 7
    %v1692 = vsub.s32 0, %v1691
    %v1693 = vrot.slane %v1688, %v1692
    %v1696 = vsel %vm81, %v1682, 0
    %v1699 = vsel %vm81, %v1683, 0
    %1701 = vmatprep.subr.mxu0 0.0
    %1702 = vmatpush1.msra.mxu0 %v1684
    %1703 = vmatprep.subr.mxu0 0.0
    %1704 = vmatpush1.msra.mxu0 %v1685
    %1705 = vmatprep.subr.mxu0 0.0
    %1706 = vmatpush1.msra.mxu0 %v1686
    %1707 = vmatprep.subr.mxu0 0.0
    %1708 = vmatpush1.msra.mxu0 %v1687
    %1709 = vmatprep.subr.mxu0 0.0
    %1710 = vmatpush1.msra.mxu0 0.0
    %1711 = vmatprep.subr.mxu0 0.0
    %1712 = vmatpush1.msra.mxu0 0.0
    %1713 = vmatprep.subr.mxu0 0.0
    %1714 = vmatpush1.msra.mxu0 0.0
    %1715 = vmatprep.subr.mxu0 0.0
    %1716 = vmatpush1.msra.mxu0 0.0
    %1717 = vmatprep.subr.mxu0 0.0
    %1718 = vmatpush1.msra.mxu0 0.0
    %1719 = vmatprep.subr.mxu0 0.0
    %1720 = vmatpush1.msra.mxu0 0.0
    %1721 = vmatprep.subr.mxu0 0.0
    %1722 = vmatpush1.msra.mxu0 0.0
    %1723 = vmatprep.subr.mxu0 0.0
    %1724 = vmatpush1.msra.mxu0 0.0
    %1725 = vmatprep.subr.mxu0 0.0
    %1726 = vmatpush1.msra.mxu0 0.0
    %1727 = vmatprep.subr.mxu0 0.0
    %1728 = vmatpush1.msra.mxu0 0.0
    %1729 = vmatprep.subr.mxu0 0.0
    %1730 = vmatpush1.msra.mxu0 0.0
    %1731 = vmatprep.subr.mxu0 0.0
    %1732 = vmatpush1.msra.mxu0 0.0
    %1733 = vmatprep.subr.mxu0 0.0
    %1734 = vmatpush1.msra.mxu0 0.0
    %1735 = vmatprep.subr.mxu0 0.0
    %1736 = vmatpush1.msra.mxu0 0.0
    %1737 = vmatprep.subr.mxu0 0.0
    %1738 = vmatpush1.msra.mxu0 0.0
    %1739 = vmatprep.subr.mxu0 0.0
    %1740 = vmatpush1.msra.mxu0 0.0
    %1741 = vmatprep.subr.mxu0 0.0
    %1742 = vmatpush1.msra.mxu0 0.0
    %1743 = vmatprep.subr.mxu0 0.0
    %1744 = vmatpush1.msra.mxu0 0.0
    %1745 = vmatprep.subr.mxu0 0.0
    %1746 = vmatpush1.msra.mxu0 0.0
    %1747 = vmatprep.subr.mxu0 0.0
    %1748 = vmatpush1.msra.mxu0 0.0
    %1749 = vmatprep.subr.mxu0 0.0
    %1750 = vmatpush1.msra.mxu0 0.0
    %1751 = vmatprep.subr.mxu0 0.0
    %1752 = vmatpush1.msra.mxu0 0.0
    %1753 = vmatprep.subr.mxu0 0.0
    %1754 = vmatpush1.msra.mxu0 0.0
    %1755 = vmatprep.subr.mxu0 0.0
    %1756 = vmatpush1.msra.mxu0 0.0
    %1757 = vmatprep.subr.mxu0 0.0
    %1758 = vmatpush1.msra.mxu0 0.0
    %1759 = vmatprep.subr.mxu0 0.0
    %1760 = vmatpush1.msra.mxu0 0.0
    %1761 = vmatprep.subr.mxu0 0.0
    %1762 = vmatpush1.msra.mxu0 0.0
    %1763 = vmatprep.subr.mxu0 0.0
    %1764 = vmatpush1.msra.mxu0 0.0
    %1765 = vmatprep.mubr.f32.mxu0 0.0
    %1766 = vmatmul.mubr.f32.gmra.mrb[0].mxu0 %v1696
    %v1767 = vpop.f32.mrb[0].mxu0
    %v1768 = vadd.f32 %v1693, %v1767
    %v1769 = vpop.f32.mrb[0].mxu0
    %1770 = vmatprep.mubr.f32.mxu0 0.0
    %1771 = vmatmul.mubr.f32.gmra.mrb[0].mxu0 %v1699
    %v1772 = vpop.f32.mrb[0].mxu0
    %v1773 = vadd.f32 %v1693, %v1772
    %v1774 = vpop.f32.mrb[0].mxu0
    %1775 = vdwg.mxu0
    %v1776 = vadd.f32 %v1768, %v68
    %v1777 = vadd.f32 %v1773, %v69
    %v1778 = vsel %vm81, %v1776, 0.0
    %1779 = vadd.xlane.f32.xlu0 %v1778
    %v1780 = vpop.xlane.xlu0 %1779
    %v1781 = vsel %vm81, %v1777, 0.0
    %1782 = vadd.xlane.f32.xlu0 %v1781
    %v1783 = vpop.xlane.xlu0 %1782
    %v1784 = vrcp.pop 32.0
    %v1785 = vmul.f32 %v1780, %v1784
    %v1786 = vmul.f32 %v1783, %v1784
    %v1787 = vsub.f32 %v1776, %v1785
    %v1788 = vsub.f32 %v1777, %v1786
    %v1789 = vmul.f32 %v1787, %v1787
    %v1790 = vmul.f32 %v1788, %v1788
    %v1791 = vsel %vm81, %v1789, 0.0
    %1792 = vadd.xlane.f32.xlu0 %v1791
    %v1793 = vpop.xlane.xlu0 %1792
    %v1794 = vsel %vm81, %v1790, 0.0
    %1795 = vadd.xlane.f32.xlu0 %v1794
    %v1796 = vpop.xlane.xlu0 %1795
    %v1797 = vmul.f32 %v1793, %v1784
    %v1798 = vmul.f32 %v1796, %v1784
    %v1799 = vadd.f32 %v1797, 1e-05
    %v1800 = vadd.f32 %v1798, 1e-05
    %v1801 = vrsqrt.pop %v1799
    %v1802 = vrsqrt.pop %v1800
    %v1803 = vmul.f32 %v1787, %v1801
    %v1804 = vmul.f32 %v1788, %v1802
    %v1805 = vld [vmem:[%s5] sm:$0x1]
    %v1807 = vlaneseq
    %v1808 = vshrl.u32 %v1807, 7
    %v1809 = vsub.s32 0, %v1808
    %v1810 = vrot.slane %v1805, %v1809
    %v1812 = vmul.f32 %v1803, %v1810
    %v1813 = vmul.f32 %v1804, %v1810
    %v1814 = vld [vmem:[%s6] sm:$0x1]
    %v1816 = vlaneseq
    %v1817 = vshrl.u32 %v1816, 7
    %v1818 = vsub.s32 0, %v1817
    %v1819 = vrot.slane %v1814, %v1818
    %v1821 = vadd.f32 %v1812, %v1819
    %v1822 = vadd.f32 %v1813, %v1819
    %1823 = vst.msk [vmem:[#allocation8] sm:$0xff] %vm81, %v1821
    %1824 = vst.msk [vmem:[#allocation8 + $0x8] sm:$0xff] %vm81, %v1822
    // Predicated region
    $region42: #{tpu_custom_call.1} parent=1 // pred_check
      _
    $region43: #{tpu_custom_call.1} parent=1 // pred_check_branch
      %1826 = sbr.rel (0) target = $region45
    $region44: #{tpu_custom_call.1} parent=1 // pred_region
      %s1828 = ssub.s32 256, 256
      %1829 = vsyncadd [#allocation4], %s1828
      %s1830 = sshll.u32 [#allocation8], 4
      %s1831 = int_to_ptr.vmem [resolvable:$true] %s1830
      %1836 = dma.vmem_to_hbm [thread:$0]  %s1831, 256, %s7, [#allocation4], 128, 128, 8
    $region45: #{tpu_custom_call.1} parent=1 // pred_fallthru
      _
    // Predicated region
    $region46: #{tpu_custom_call.1} parent=1 // pred_check
      _
    $region47: #{tpu_custom_call.1} parent=1 // pred_check_branch
      %1838 = sbr.rel (0) target = $region49
    $region48: #{tpu_custom_call.1} parent=1 // pred_region
      %1839 = dma.done [#allocation4], 256
    $region49: #{tpu_custom_call.1} parent=1 // pred_fallthru
      _
    %1840 = vsyncpa [#allocation3], 1
    %1841 = vsyncpa [#allocation6], 1
    %1842 = vsyncpa [#allocation4], 1

</llo_original>
